<compile_context>
chip_gen: v6e
topology: v6e:2x2x1
jax: 0.10.0
libtpu: 0.0.40
codegen_flags: <defaults>
</compile_context>

<pallas_src>
import functools

import jax
import jax.numpy as jnp
from jax.experimental import pallas as pl
from jax.experimental.pallas import tpu as pltpu


_NEG_BIG = -1e30  # finite "minus infinity" for masking padded softmax rows


# ----------------------------- Pallas kernel ------------------------------- #

def _fused_gcn_kernel(a_t_ref, s_ref, d2_ref, x_ref, w1_ref, b1_ref,
                      wh_ref, bh_ref, w2_ref, b2_ref,
                      out_ref, emb_ref, *, n_hidden, out_dim):
    """Fused GCN forward in transposed (feature-major) layout.

    a_t_ref : [Np, Np] bf16  -- A_sl^T (symmetric-normalized adjacency WITH self loops)
    s_ref   : [1,  Np] f32   -- dinv_ns / dinv_sl      (conv2 rescale)
    d2_ref  : [1,  Np] f32   -- dinv_ns^2              (conv2 diagonal correction)
    x_ref   : [Fp, Np] bf16  -- X^T
    w*_ref  : transposed weights (bf16), b*_ref: [F, 1] f32 biases
    out_ref / emb_ref : [Op, Np] f32 (log_softmax^T, embedding^T)
    """
    a_t = a_t_ref[...]                                         # [Np, Np] bf16

    # conv1: h^T = relu( (W1^T @ X^T) @ A_sl^T + b1 )
    p = jnp.dot(w1_ref[...], x_ref[...], preferred_element_type=jnp.float32)
    t = jnp.dot(p.astype(jnp.bfloat16), a_t, preferred_element_type=jnp.float32)
    h = jnp.maximum(t + b1_ref[...], 0.0).astype(jnp.bfloat16)  # bf16 carry

    # Hidden GCNConv layers (static unroll; n_hidden is a compile-time const).
    for l in range(n_hidden):
        p = jnp.dot(wh_ref[l], h, preferred_element_type=jnp.float32)
        t = jnp.dot(p.astype(jnp.bfloat16), a_t, preferred_element_type=jnp.float32)
        h = jnp.maximum(t + bh_ref[l], 0.0).astype(jnp.bfloat16)

    # conv2 (gcn_norm WITHOUT self loops), expressed through A_sl:
    #   A_ns = S @ A_sl @ S - D_ns^{-1},  S = diag(dinv_ns / dinv_sl)
    # transposed:  emb^T = ((p * s) @ A_sl^T) * s - p * dinv_ns^2 + b2
    s = s_ref[...]                                              # [1, Np] f32
    p = jnp.dot(w2_ref[...], h, preferred_element_type=jnp.float32)      # [Op, Np]
    agg = jnp.dot((p * s).astype(jnp.bfloat16), a_t,
                  preferred_element_type=jnp.float32)
    emb = agg * s - p * d2_ref[...] + b2_ref[...]
    emb_ref[...] = emb.astype(emb_ref.dtype)

    # log_softmax over the REAL class rows only (axis 0 in transposed layout).
    row = jax.lax.broadcasted_iota(jnp.int32, emb.shape, 0)
    masked = jnp.where(row < out_dim, emb, _NEG_BIG)
    m = jnp.max(masked, axis=0, keepdims=True)
    z = masked - m
    lse = jnp.log(jnp.sum(jnp.exp(z), axis=0, keepdims=True))
    out_ref[...] = (z - lse).astype(out_ref.dtype)


# ------------------------------ JAX glue ----------------------------------- #

def _round_up(x, m):
    return (x + m - 1) // m * m


def _pad2(a, rows, cols):
    return jnp.pad(a, ((0, rows - a.shape[0]), (0, cols - a.shape[1])))


def _vmem_limit_bytes():
    """Per-generation VMEM limit: ~80% of physical (≈51 MiB v7x, ≈102 MiB v5e/v6e)."""
    try:
        info = pltpu.get_tpu_info()
        cap = getattr(info, "vmem_capacity_bytes", None)
        if cap:
            return int(cap * 0.8)
    except Exception:
        pass
    return 48 * 1024 * 1024  # conservative fallback (fits v7x's 64 MiB)


def build_padded_graph(edge_index, num_nodes, num_nodes_pad):
    """One-pass build of padded A_sl^T (bf16) and the conv2 rescale vectors.

    A_sl[d, s] = dinv_sl[s] * dinv_sl[d]  summed over edges (self loops added),
    dinv counted at dst.  Returned transposed (a_t[s, d] = A_sl[d, s]) and
    scattered directly into the padded buffer (padded rows/cols stay zero).
    """
    src = edge_index[0]
    dst = edge_index[1]
    loop = jnp.arange(num_nodes, dtype=src.dtype)
    src_sl = jnp.concatenate([src, loop])
    dst_sl = jnp.concatenate([dst, loop])

    deg_sl = jnp.zeros((num_nodes,), jnp.float32).at[dst_sl].add(1.0)
    deg_ns = jnp.zeros((num_nodes,), jnp.float32).at[dst].add(1.0)
    dinv_sl = jnp.where(deg_sl > 0, 1.0 / jnp.sqrt(jnp.maximum(deg_sl, 1e-12)), 0.0)
    dinv_ns = jnp.where(deg_ns > 0, 1.0 / jnp.sqrt(jnp.maximum(deg_ns, 1e-12)), 0.0)

    w = dinv_sl[src_sl] * dinv_sl[dst_sl]
    a_t = (jnp.zeros((num_nodes_pad, num_nodes_pad), jnp.float32)
           .at[src_sl, dst_sl].add(w)).astype(jnp.bfloat16)

    s = jnp.where(dinv_sl > 0, dinv_ns / dinv_sl, 0.0)
    d2 = dinv_ns * dinv_ns
    s_p = jnp.zeros((1, num_nodes_pad), jnp.float32).at[0, :num_nodes].set(s)
    d2_p = jnp.zeros((1, num_nodes_pad), jnp.float32).at[0, :num_nodes].set(d2)
    return a_t, s_p, d2_p


def build_norm_adj(edge_index, num_nodes, add_self_loops):
    """Dense symmetric-normalized adjacency (pure-JAX reference path)."""
    src = edge_index[0]
    dst = edge_index[1]
    if add_self_loops:
        loop = jnp.arange(num_nodes, dtype=src.dtype)
        src = jnp.concatenate([src, loop])
        dst = jnp.concatenate([dst, loop])
    deg = jnp.zeros((num_nodes,), jnp.float32).at[dst].add(1.0)
    dinv = jnp.where(deg > 0, 1.0 / jnp.sqrt(jnp.maximum(deg, 1e-12)), 0.0)
    w = dinv[src] * dinv[dst]
    return jnp.zeros((num_nodes, num_nodes), jnp.float32).at[dst, src].add(w)


def init_params(key, max_layer, feature_dim, hidden_dim, out_dim):
    """Deterministic synthetic parameters (GCNConv lin weight + bias per layer)."""
    params = {}
    k = key

    def dense(k, fin, fout):
        k, sub = jax.random.split(k)
        scale = 1.0 / jnp.sqrt(jnp.float32(fin))
        w = jax.random.uniform(sub, (fin, fout), jnp.float32, -scale, scale)
        return k, w

    k, params["w1"] = dense(k, feature_dim, hidden_dim)
    params["b1"] = jnp.zeros((hidden_dim,), jnp.float32)
    params["hidden"] = []
    for _ in range(max_layer - 2):
        k, wh = dense(k, hidden_dim, hidden_dim)
        params["hidden"].append((wh, jnp.zeros((hidden_dim,), jnp.float32)))
    k, params["w2"] = dense(k, hidden_dim, out_dim)
    params["b2"] = jnp.zeros((out_dim,), jnp.float32)
    # TODO(synk): self.conv and self.linear exist in __init__ but are unused in forward.
    return params


def gcn_net_forward(params, x, edge_index):
    """Runs the whole GCN_NET forward in one fused Pallas kernel."""
    n, f_in = x.shape
    w1, b1 = params["w1"], params["b1"]
    w2, b2 = params["w2"], params["b2"]
    hidden = params["hidden"]
    hidden_dim = w1.shape[1]
    out_dim = w2.shape[1]
    n_hidden = len(hidden)

    # Pad every dim to a multiple of 128: nodes are the MXU output-lane axis in
    # the transposed layout; features are sublane axes.  Zero padding is exact
    # (padded A rows/cols and weight rows/cols are zero, padded-node garbage
    # never leaks into real nodes because A's padded columns are zero).
    np_ = _round_up(n, 128)
    fp = _round_up(f_in, 128)
    hp = _round_up(hidden_dim, 128)
    op = _round_up(out_dim, 128)

    a_t_p, s_p, d2_p = build_padded_graph(edge_index, n, np_)     # bf16 / f32 / f32

    # Transposed, bf16 weights & features; f32 biases as [F, 1] columns.
    xT_p = _pad2(x.T, fp, np_).astype(jnp.bfloat16)
    w1T_p = _pad2(w1.T, hp, fp).astype(jnp.bfloat16)
    b1_p = _pad2(b1.reshape(-1, 1), hp, 1)
    w2T_p = _pad2(w2.T, op, hp).astype(jnp.bfloat16)
    b2_p = _pad2(b2.reshape(-1, 1), op, 1)

    if n_hidden:
        whT_p = jnp.stack([_pad2(wh.T, hp, hp) for wh, _ in hidden]).astype(jnp.bfloat16)
        bh_p = jnp.stack([_pad2(bh.reshape(-1, 1), hp, 1) for _, bh in hidden])
        n_hid_alloc = n_hidden
    else:
        n_hid_alloc = 1  # keep a non-empty (dummy) buffer
        whT_p = jnp.zeros((1, hp, hp), jnp.bfloat16)
        bh_p = jnp.zeros((1, hp, 1), jnp.float32)

    kernel = functools.partial(_fused_gcn_kernel,
                               n_hidden=n_hidden, out_dim=out_dim)

    # Gridless call: single pipeline step -> each operand gets ONE VMEM window
    # (no double-buffering of the Np^2 adjacency).
    outT_p, embT_p = pl.pallas_call(
        kernel,
        out_shape=(jax.ShapeDtypeStruct((op, np_), jnp.float32),
                   jax.ShapeDtypeStruct((op, np_), jnp.float32)),
        in_specs=[
            pl.BlockSpec((np_, np_), lambda: (0, 0)),                 # A_sl^T (bf16)
            pl.BlockSpec((1, np_), lambda: (0, 0)),                   # s = dinv_ns/dinv_sl
            pl.BlockSpec((1, np_), lambda: (0, 0)),                   # dinv_ns^2
            pl.BlockSpec((fp, np_), lambda: (0, 0)),                  # X^T
            pl.BlockSpec((hp, fp), lambda: (0, 0)),                   # W1^T
            pl.BlockSpec((hp, 1), lambda: (0, 0)),                    # b1
            pl.BlockSpec((n_hid_alloc, hp, hp), lambda: (0, 0, 0)),   # stacked Wh^T
            pl.BlockSpec((n_hid_alloc, hp, 1), lambda: (0, 0, 0)),    # stacked bh
            pl.BlockSpec((op, hp), lambda: (0, 0)),                   # W2^T
            pl.BlockSpec((op, 1), lambda: (0, 0)),                    # b2
        ],
        out_specs=(pl.BlockSpec((op, np_), lambda: (0, 0)),           # log_softmax^T
                   pl.BlockSpec((op, np_), lambda: (0, 0))),          # embedding^T
        compiler_params=pltpu.CompilerParams(
            vmem_limit_bytes=_vmem_limit_bytes()),
    )(a_t_p, s_p, d2_p, xT_p, w1T_p, b1_p, whT_p, bh_p, w2T_p, b2_p)

    # Small transposes on the host side back to [N, out_dim].
    return outT_p[:out_dim, :n].T, embT_p[:out_dim, :n].T


def reference_forward(params, x, edge_index):
    """Pure-JAX f32 reference for validation."""
    n = x.shape[0]
    a_sl = build_norm_adj(edge_index, n, add_self_loops=True)
    a_ns = build_norm_adj(edge_index, n, add_self_loops=False)
    h = jax.nn.relu(a_sl @ (x @ params["w1"]) + params["b1"])
    for wh, bh in params["hidden"]:
        h = jax.nn.relu(a_sl @ (h @ wh) + bh)
    emb = a_ns @ (h @ params["w2"]) + params["b2"]
    return jax.nn.log_softmax(emb, axis=1), emb


# --------------------------------- main ------------------------------------ #

if __name__ == "__main__":
    max_layer = 3          # -> 1 hidden GCNConv layer
    feature_dim = 8
    hidden_dim = 32
    out_dim = 8
    num_nodes = 16
    num_edges = 40

    key = jax.random.PRNGKey(0)
    k_x, k_src, k_dst, k_par = jax.random.split(key, 4)

    x = jax.random.normal(k_x, (num_nodes, feature_dim), jnp.float32)
    src = jax.random.randint(k_src, (num_edges,), 0, num_nodes, jnp.int32)
    dst = jax.random.randint(k_dst, (num_edges,), 0, num_nodes, jnp.int32)
    edge_index = jnp.stack([src, dst], axis=0)   # [2, E], like data.edge_index

    params = init_params(k_par, max_layer, feature_dim, hidden_dim, out_dim)

    out, emb = gcn_net_forward(params, x, edge_index)
    out = jax.block_until_ready(out)
    emb = jax.block_until_ready(emb)

    assert out.shape == (num_nodes, out_dim)
    assert emb.shape == (num_nodes, out_dim)
    assert bool(jnp.all(jnp.isfinite(out)))
    # rows of log_softmax exponentiate-sum to 1
    assert bool(jnp.allclose(jnp.sum(jnp.exp(out), axis=1), 1.0, atol=1e-4))

    # validate the bf16 kernel (bf16 A / weights / activations) against the
    # f32 pure-JAX reference
    ref_out, ref_emb = reference_forward(params, x, edge_index)
    assert bool(jnp.allclose(out, ref_out, atol=0.15))
    assert bool(jnp.allclose(emb, ref_emb, atol=0.15))

    print("KERNEL_OK")
</pallas_src>

<mosaic_0001>
module attributes {stable_mosaic.version = 11 : i64} {
  func.func @_fused_gcn_kernel(%arg0: memref<128x128xbf16, #tpu.memory_space<vmem>>, %arg1: memref<1x128xf32, #tpu.memory_space<vmem>>, %arg2: memref<1x128xf32, #tpu.memory_space<vmem>>, %arg3: memref<128x128xbf16, #tpu.memory_space<vmem>>, %arg4: memref<128x128xbf16, #tpu.memory_space<vmem>>, %arg5: memref<128x1xf32, #tpu.memory_space<vmem>>, %arg6: memref<1x128x128xbf16, #tpu.memory_space<vmem>>, %arg7: memref<1x128x1xf32, #tpu.memory_space<vmem>>, %arg8: memref<128x128xbf16, #tpu.memory_space<vmem>>, %arg9: memref<128x1xf32, #tpu.memory_space<vmem>>, %arg10: memref<128x128xf32, #tpu.memory_space<vmem>>, %arg11: memref<128x128xf32, #tpu.memory_space<vmem>>) attributes {dimension_semantics = [], scalar_prefetch = 0 : i64, scratch_operands = 0 : i64, tpu.core_type = #tpu.core_type<tc>} {
    %c0 = arith.constant 0 : index
    %c0_0 = arith.constant 0 : index
    %0 = vector.load %arg0[%c0, %c0_0] : memref<128x128xbf16, #tpu.memory_space<vmem>>, vector<128x128xbf16>
    %c0_1 = arith.constant 0 : index
    %c0_2 = arith.constant 0 : index
    %1 = vector.load %arg4[%c0_1, %c0_2] : memref<128x128xbf16, #tpu.memory_space<vmem>>, vector<128x128xbf16>
    %c0_3 = arith.constant 0 : index
    %c0_4 = arith.constant 0 : index
    %2 = vector.load %arg3[%c0_3, %c0_4] : memref<128x128xbf16, #tpu.memory_space<vmem>>, vector<128x128xbf16>
    %cst = arith.constant dense<0.000000e+00> : vector<128x128xf32>
    %3 = tpu.matmul %1, %2, %cst {dimension_numbers = #tpu.dot_dimension_numbers<[1], [0], [0], [1], [0, 0, 1, 1], [], []>} : vector<128x128xbf16>, vector<128x128xbf16>, vector<128x128xf32> -> vector<128x128xf32>
    %4 = arith.truncf %3 : vector<128x128xf32> to vector<128x128xbf16>
    %cst_5 = arith.constant dense<0.000000e+00> : vector<128x128xf32>
    %5 = tpu.matmul %4, %0, %cst_5 {dimension_numbers = #tpu.dot_dimension_numbers<[1], [0], [0], [1], [0, 0, 1, 1], [], []>} : vector<128x128xbf16>, vector<128x128xbf16>, vector<128x128xf32> -> vector<128x128xf32>
    %c0_6 = arith.constant 0 : index
    %c0_7 = arith.constant 0 : index
    %6 = vector.load %arg5[%c0_6, %c0_7] : memref<128x1xf32, #tpu.memory_space<vmem>>, vector<128x1xf32>
    %7 = vector.broadcast %6 : vector<128x1xf32> to vector<128x128xf32>
    %8 = arith.addf %5, %7 : vector<128x128xf32>
    %cst_8 = arith.constant 0.000000e+00 : f32
    %9 = vector.broadcast %cst_8 : f32 to vector<128x128xf32>
    %10 = arith.maximumf %8, %9 : vector<128x128xf32>
    %11 = arith.truncf %10 : vector<128x128xf32> to vector<128x128xbf16>
    %c0_9 = arith.constant 0 : index
    %c0_10 = arith.constant 0 : index
    %c0_11 = arith.constant 0 : index
    %12 = vector.load %arg6[%c0_9, %c0_10, %c0_11] : memref<1x128x128xbf16, #tpu.memory_space<vmem>>, vector<1x128x128xbf16>
    %13 = vector.shape_cast %12 : vector<1x128x128xbf16> to vector<128x128xbf16>
    %cst_12 = arith.constant dense<0.000000e+00> : vector<128x128xf32>
    %14 = tpu.matmul %13, %11, %cst_12 {dimension_numbers = #tpu.dot_dimension_numbers<[1], [0], [0], [1], [0, 0, 1, 1], [], []>} : vector<128x128xbf16>, vector<128x128xbf16>, vector<128x128xf32> -> vector<128x128xf32>
    %15 = arith.truncf %14 : vector<128x128xf32> to vector<128x128xbf16>
    %cst_13 = arith.constant dense<0.000000e+00> : vector<128x128xf32>
    %16 = tpu.matmul %15, %0, %cst_13 {dimension_numbers = #tpu.dot_dimension_numbers<[1], [0], [0], [1], [0, 0, 1, 1], [], []>} : vector<128x128xbf16>, vector<128x128xbf16>, vector<128x128xf32> -> vector<128x128xf32>
    %c0_14 = arith.constant 0 : index
    %c0_15 = arith.constant 0 : index
    %c0_16 = arith.constant 0 : index
    %17 = vector.load %arg7[%c0_14, %c0_15, %c0_16] : memref<1x128x1xf32, #tpu.memory_space<vmem>>, vector<1x128x1xf32>
    %18 = vector.shape_cast %17 : vector<1x128x1xf32> to vector<128x1xf32>
    %19 = vector.broadcast %18 : vector<128x1xf32> to vector<128x128xf32>
    %20 = arith.addf %16, %19 : vector<128x128xf32>
    %cst_17 = arith.constant 0.000000e+00 : f32
    %21 = vector.broadcast %cst_17 : f32 to vector<128x128xf32>
    %22 = arith.maximumf %20, %21 : vector<128x128xf32>
    %23 = arith.truncf %22 : vector<128x128xf32> to vector<128x128xbf16>
    %c0_18 = arith.constant 0 : index
    %c0_19 = arith.constant 0 : index
    %24 = vector.load %arg1[%c0_18, %c0_19] : memref<1x128xf32, #tpu.memory_space<vmem>>, vector<1x128xf32>
    %c0_20 = arith.constant 0 : index
    %c0_21 = arith.constant 0 : index
    %25 = vector.load %arg8[%c0_20, %c0_21] : memref<128x128xbf16, #tpu.memory_space<vmem>>, vector<128x128xbf16>
    %cst_22 = arith.constant dense<0.000000e+00> : vector<128x128xf32>
    %26 = tpu.matmul %25, %23, %cst_22 {dimension_numbers = #tpu.dot_dimension_numbers<[1], [0], [0], [1], [0, 0, 1, 1], [], []>} : vector<128x128xbf16>, vector<128x128xbf16>, vector<128x128xf32> -> vector<128x128xf32>
    %27 = vector.broadcast %24 : vector<1x128xf32> to vector<128x128xf32>
    %28 = arith.mulf %26, %27 : vector<128x128xf32>
    %29 = arith.truncf %28 : vector<128x128xf32> to vector<128x128xbf16>
    %cst_23 = arith.constant dense<0.000000e+00> : vector<128x128xf32>
    %30 = tpu.matmul %29, %0, %cst_23 {dimension_numbers = #tpu.dot_dimension_numbers<[1], [0], [0], [1], [0, 0, 1, 1], [], []>} : vector<128x128xbf16>, vector<128x128xbf16>, vector<128x128xf32> -> vector<128x128xf32>
    %31 = vector.broadcast %24 : vector<1x128xf32> to vector<128x128xf32>
    %32 = arith.mulf %30, %31 : vector<128x128xf32>
    %c0_24 = arith.constant 0 : index
    %c0_25 = arith.constant 0 : index
    %33 = vector.load %arg2[%c0_24, %c0_25] : memref<1x128xf32, #tpu.memory_space<vmem>>, vector<1x128xf32>
    %34 = vector.broadcast %33 : vector<1x128xf32> to vector<128x128xf32>
    %35 = arith.mulf %26, %34 : vector<128x128xf32>
    %36 = arith.subf %32, %35 : vector<128x128xf32>
    %c0_26 = arith.constant 0 : index
    %c0_27 = arith.constant 0 : index
    %37 = vector.load %arg9[%c0_26, %c0_27] : memref<128x1xf32, #tpu.memory_space<vmem>>, vector<128x1xf32>
    %38 = vector.broadcast %37 : vector<128x1xf32> to vector<128x128xf32>
    %39 = arith.addf %36, %38 : vector<128x128xf32>
    %c0_28 = arith.constant 0 : index
    %c0_29 = arith.constant 0 : index
    %40 = vector.load %arg11[%c0_28, %c0_29] : memref<128x128xf32, #tpu.memory_space<vmem>>, vector<128x128xf32>
    tpu.vector_store %arg11[%c0_28, %c0_29], %39 {strides = array<i32>} : memref<128x128xf32, #tpu.memory_space<vmem>>, vector<128x128xf32>,
    %41 = tpu.iota {dimensions = array<i32: 0>} : vector<128x128xi32>
    %c8_i32 = arith.constant 8 : i32
    %42 = vector.broadcast %c8_i32 : i32 to vector<128x128xi32>
    %43 = arith.cmpi slt, %41, %42 : vector<128x128xi32>
    %cst_30 = arith.constant -1.000000e+30 : f32
    %44 = vector.broadcast %cst_30 : f32 to vector<128x128xf32>
    %45 = arith.select %43, %39, %44 : vector<128x128xi1>, vector<128x128xf32>
    %cst_31 = arith.constant dense<0xFF800000> : vector<128xf32>
    %46 = vector.multi_reduction <maximumf>, %45, %cst_31 [0] : vector<128x128xf32> to vector<128xf32>
    %47 = vector.shape_cast %46 : vector<128xf32> to vector<1x128xf32>
    %48 = vector.broadcast %47 : vector<1x128xf32> to vector<128x128xf32>
    %49 = arith.subf %45, %48 : vector<128x128xf32>
    %50 = math.exp %49 : vector<128x128xf32>
    %cst_32 = arith.constant dense<0.000000e+00> : vector<128xf32>
    %51 = vector.multi_reduction <add>, %50, %cst_32 [0] : vector<128x128xf32> to vector<128xf32>
    %52 = vector.shape_cast %51 : vector<128xf32> to vector<1x128xf32>
    %53 = math.log %52 : vector<1x128xf32>
    %54 = vector.broadcast %53 : vector<1x128xf32> to vector<128x128xf32>
    %55 = arith.subf %49, %54 : vector<128x128xf32>
    %c0_33 = arith.constant 0 : index
    %c0_34 = arith.constant 0 : index
    %56 = vector.load %arg10[%c0_33, %c0_34] : memref<128x128xf32, #tpu.memory_space<vmem>>, vector<128x128xf32>
    tpu.vector_store %arg10[%c0_33, %c0_34], %55 {strides = array<i32>} : memref<128x128xf32, #tpu.memory_space<vmem>>, vector<128x128xf32>,
    return
  }
}

</mosaic_0001>

<llo_original>
// kernel: tpu_custom_call.1
$region0: #{tpu_custom_call.1}
  #allocation0 [shape = 'u32[]', space=smem, size = 0x4, offset = 0x4, fixed_abs, tag = 'smem constant byte address 0x4 - core index']
  #allocation1 [shape = 'u32[144,128]{1,0:T(1,128)}', space=vmem, size = 0x12000, scoped, tag = 'internal scratch']
  %s0 = inlined_call_operand.vmem [shape: bf16[128,128], index: 0, kind: input, shape index: {}]
  %s1 = inlined_call_operand.vmem [shape: f32[1,128], index: 1, kind: input, shape index: {}]
  %s2 = inlined_call_operand.vmem [shape: f32[1,128], index: 2, kind: input, shape index: {}]
  %s3 = inlined_call_operand.vmem [shape: bf16[128,128], index: 3, kind: input, shape index: {}]
  %s4 = inlined_call_operand.vmem [shape: bf16[128,128], index: 4, kind: input, shape index: {}]
  %s5 = inlined_call_operand.vmem [shape: f32[128,1], index: 5, kind: input, shape index: {}]
  %s6 = inlined_call_operand.vmem [shape: bf16[1,128,128], index: 6, kind: input, shape index: {}]
  %s7 = inlined_call_operand.vmem [shape: f32[1,128,1], index: 7, kind: input, shape index: {}]
  %s8 = inlined_call_operand.vmem [shape: bf16[128,128], index: 8, kind: input, shape index: {}]
  %s9 = inlined_call_operand.vmem [shape: f32[128,1], index: 9, kind: input, shape index: {}]
  %s10 = inlined_call_operand.hbm [shape: f32[128,128], index: 10, kind: output, shape index: {0}]
  %s11 = inlined_call_operand.hbm [shape: f32[128,128], index: 11, kind: output, shape index: {1}]
  %12 = xla_tuple %s10, %s11
  %s13 = sld [smem:[#allocation0]]
  $region58: #{tpu_custom_call.1} parent=0
    _
  %s15 = ssub.s32 1, %s13
  %s16 = scalar_select 0, %s15, %s13
  $region1: #{tpu_custom_call.1} parent=0
    #allocation2 [shape = 'u8[65536]{0}', space=vmem, size = 0x10000, scoped, tag = 'output window, operand 0, single buffered']
    #allocation3 [shape = 's32[1]{0}', space=sflag, size = 0x4, scoped, tag = 'scoped memory for tpu_custom_call.1']
    #allocation4 [shape = 'u8[65536]{0}', space=vmem, size = 0x10000, scoped, tag = 'output window, operand 1, single buffered']
    #allocation5 [shape = 's32[1]{0}', space=sflag, size = 0x4, scoped, tag = 'scoped memory for tpu_custom_call.1']
    %17 = vsyncpa [#allocation3], 0
    %18 = vsyncpa [#allocation5], 0
    // Predicated region
    $region2: #{tpu_custom_call.1} parent=1 // pred_check
      _
    $region3: #{tpu_custom_call.1} parent=1 // pred_check_branch
      %20 = sbr.rel (0) target = $region5
    $region4: #{tpu_custom_call.1} parent=1 // pred_region
      _
    $region5: #{tpu_custom_call.1} parent=1 // pred_fallthru
      _
    // Predicated region
    $region6: #{tpu_custom_call.1} parent=1 // pred_check
      _
    $region7: #{tpu_custom_call.1} parent=1 // pred_check_branch
      %22 = sbr.rel (0) target = $region9
    $region8: #{tpu_custom_call.1} parent=1 // pred_region
      _
    $region9: #{tpu_custom_call.1} parent=1 // pred_fallthru
      _
    // Predicated region
    $region10: #{tpu_custom_call.1} parent=1 // pred_check
      _
    $region11: #{tpu_custom_call.1} parent=1 // pred_check_branch
      %24 = sbr.rel (0) target = $region13
    $region12: #{tpu_custom_call.1} parent=1 // pred_region
      _
    $region13: #{tpu_custom_call.1} parent=1 // pred_fallthru
      _
    // Predicated region
    $region14: #{tpu_custom_call.1} parent=1 // pred_check
      _
    $region15: #{tpu_custom_call.1} parent=1 // pred_check_branch
      %26 = sbr.rel (0) target = $region17
    $region16: #{tpu_custom_call.1} parent=1 // pred_region
      _
    $region17: #{tpu_custom_call.1} parent=1 // pred_fallthru
      _
    // Predicated region
    $region18: #{tpu_custom_call.1} parent=1 // pred_check
      _
    $region19: #{tpu_custom_call.1} parent=1 // pred_check_branch
      %28 = sbr.rel (0) target = $region21
    $region20: #{tpu_custom_call.1} parent=1 // pred_region
      _
    $region21: #{tpu_custom_call.1} parent=1 // pred_fallthru
      _
    // Predicated region
    $region22: #{tpu_custom_call.1} parent=1 // pred_check
      _
    $region23: #{tpu_custom_call.1} parent=1 // pred_check_branch
      %30 = sbr.rel (0) target = $region25
    $region24: #{tpu_custom_call.1} parent=1 // pred_region
      _
    $region25: #{tpu_custom_call.1} parent=1 // pred_fallthru
      _
    // Predicated region
    $region26: #{tpu_custom_call.1} parent=1 // pred_check
      _
    $region27: #{tpu_custom_call.1} parent=1 // pred_check_branch
      %32 = sbr.rel (0) target = $region29
    $region28: #{tpu_custom_call.1} parent=1 // pred_region
      _
    $region29: #{tpu_custom_call.1} parent=1 // pred_fallthru
      _
    // Predicated region
    $region30: #{tpu_custom_call.1} parent=1 // pred_check
      _
    $region31: #{tpu_custom_call.1} parent=1 // pred_check_branch
      %34 = sbr.rel (0) target = $region33
    $region32: #{tpu_custom_call.1} parent=1 // pred_region
      _
    $region33: #{tpu_custom_call.1} parent=1 // pred_fallthru
      _
    // Predicated region
    $region34: #{tpu_custom_call.1} parent=1 // pred_check
      _
    $region35: #{tpu_custom_call.1} parent=1 // pred_check_branch
      %36 = sbr.rel (0) target = $region37
    $region36: #{tpu_custom_call.1} parent=1 // pred_region
      _
    $region37: #{tpu_custom_call.1} parent=1 // pred_fallthru
      _
    // Predicated region
    $region38: #{tpu_custom_call.1} parent=1 // pred_check
      _
    $region39: #{tpu_custom_call.1} parent=1 // pred_check_branch
      %38 = sbr.rel (0) target = $region41
    $region40: #{tpu_custom_call.1} parent=1 // pred_region
      _
    $region41: #{tpu_custom_call.1} parent=1 // pred_fallthru
      _
    %v40 = vld [vmem:[%s0] sm:$0xf]
    %v41 = vld [vmem:[%s0 + $0x4] sm:$0xf]
    %v42 = vld [vmem:[%s0 + $0x8] sm:$0xf]
    %v43 = vld [vmem:[%s0 + $0xc] sm:$0xf]
    %v44 = vld [vmem:[%s0 + $0x10] sm:$0xf]
    %v45 = vld [vmem:[%s0 + $0x14] sm:$0xf]
    %v46 = vld [vmem:[%s0 + $0x18] sm:$0xf]
    %v47 = vld [vmem:[%s0 + $0x1c] sm:$0xf]
    %v48 = vld [vmem:[%s0 + $0x20] sm:$0xf]
    %v49 = vld [vmem:[%s0 + $0x24] sm:$0xf]
    %v50 = vld [vmem:[%s0 + $0x28] sm:$0xf]
    %v51 = vld [vmem:[%s0 + $0x2c] sm:$0xf]
    %v52 = vld [vmem:[%s0 + $0x30] sm:$0xf]
    %v53 = vld [vmem:[%s0 + $0x34] sm:$0xf]
    %v54 = vld [vmem:[%s0 + $0x38] sm:$0xf]
    %v55 = vld [vmem:[%s0 + $0x3c] sm:$0xf]
    %v56 = vld [vmem:[%s4] sm:$0xf]
    %v57 = vld [vmem:[%s4 + $0x4] sm:$0xf]
    %v58 = vld [vmem:[%s4 + $0x8] sm:$0xf]
    %v59 = vld [vmem:[%s4 + $0xc] sm:$0xf]
    %v60 = vld [vmem:[%s4 + $0x10] sm:$0xf]
    %v61 = vld [vmem:[%s4 + $0x14] sm:$0xf]
    %v62 = vld [vmem:[%s4 + $0x18] sm:$0xf]
    %v63 = vld [vmem:[%s4 + $0x1c] sm:$0xf]
    %v64 = vld [vmem:[%s4 + $0x20] sm:$0xf]
    %v65 = vld [vmem:[%s4 + $0x24] sm:$0xf]
    %v66 = vld [vmem:[%s4 + $0x28] sm:$0xf]
    %v67 = vld [vmem:[%s4 + $0x2c] sm:$0xf]
    %v68 = vld [vmem:[%s4 + $0x30] sm:$0xf]
    %v69 = vld [vmem:[%s4 + $0x34] sm:$0xf]
    %v70 = vld [vmem:[%s4 + $0x38] sm:$0xf]
    %v71 = vld [vmem:[%s4 + $0x3c] sm:$0xf]
    %v72 = vld [vmem:[%s3] sm:$0xf]
    %v73 = vld [vmem:[%s3 + $0x4] sm:$0xf]
    %v74 = vld [vmem:[%s3 + $0x8] sm:$0xf]
    %v75 = vld [vmem:[%s3 + $0xc] sm:$0xf]
    %v76 = vld [vmem:[%s3 + $0x10] sm:$0xf]
    %v77 = vld [vmem:[%s3 + $0x14] sm:$0xf]
    %v78 = vld [vmem:[%s3 + $0x18] sm:$0xf]
    %v79 = vld [vmem:[%s3 + $0x1c] sm:$0xf]
    %v80 = vld [vmem:[%s3 + $0x20] sm:$0xf]
    %v81 = vld [vmem:[%s3 + $0x24] sm:$0xf]
    %v82 = vld [vmem:[%s3 + $0x28] sm:$0xf]
    %v83 = vld [vmem:[%s3 + $0x2c] sm:$0xf]
    %v84 = vld [vmem:[%s3 + $0x30] sm:$0xf]
    %v85 = vld [vmem:[%s3 + $0x34] sm:$0xf]
    %v86 = vld [vmem:[%s3 + $0x38] sm:$0xf]
    %v87 = vld [vmem:[%s3 + $0x3c] sm:$0xf]
    %v104 = vunpack.c.l.b16 %v56
    %v105 = vunpack.c.l.b16 %v57
    %v106 = vunpack.c.l.b16 %v58
    %v107 = vunpack.c.l.b16 %v59
    %v108 = vunpack.c.l.b16 %v60
    %v109 = vunpack.c.l.b16 %v61
    %v110 = vunpack.c.l.b16 %v62
    %v111 = vunpack.c.l.b16 %v63
    %v112 = vunpack.c.l.b16 %v64
    %v113 = vunpack.c.l.b16 %v65
    %v114 = vunpack.c.l.b16 %v66
    %v115 = vunpack.c.l.b16 %v67
    %v116 = vunpack.c.l.b16 %v68
    %v117 = vunpack.c.l.b16 %v69
    %v118 = vunpack.c.l.b16 %v70
    %v119 = vunpack.c.l.b16 %v71
    %v120 = vpack.c.b16 %v105, %v104
    %v121 = vpack.c.b16 %v107, %v106
    %v122 = vpack.c.b16 %v109, %v108
    %v123 = vpack.c.b16 %v111, %v110
    %v124 = vpack.c.b16 %v113, %v112
    %v125 = vpack.c.b16 %v115, %v114
    %v126 = vpack.c.b16 %v117, %v116
    %v127 = vpack.c.b16 %v119, %v118
    %v152 = vunpack.c.l.b16 %v72
    %v153 = vunpack.c.l.b16 %v73
    %v154 = vunpack.c.l.b16 %v74
    %v155 = vunpack.c.l.b16 %v75
    %v156 = vunpack.c.l.b16 %v76
    %v157 = vunpack.c.l.b16 %v77
    %v158 = vunpack.c.l.b16 %v78
    %v159 = vunpack.c.l.b16 %v79
    %v160 = vunpack.c.l.b16 %v80
    %v161 = vunpack.c.l.b16 %v81
    %v162 = vunpack.c.l.b16 %v82
    %v163 = vunpack.c.l.b16 %v83
    %v164 = vunpack.c.l.b16 %v84
    %v165 = vunpack.c.l.b16 %v85
    %v166 = vunpack.c.l.b16 %v86
    %v167 = vunpack.c.l.b16 %v87
    %v168 = vpack.c.b16 %v153, %v152
    %v169 = vpack.c.b16 %v155, %v154
    %v170 = vpack.c.b16 %v157, %v156
    %v171 = vpack.c.b16 %v159, %v158
    %v172 = vpack.c.b16 %v161, %v160
    %v173 = vpack.c.b16 %v163, %v162
    %v174 = vpack.c.b16 %v165, %v164
    %v175 = vpack.c.b16 %v167, %v166
    %184 = vmatprep.subr.bf16.mxu0 0
    %185 = vmatpush1.bf16.msra.mxu0 %v175
    %186 = vmatprep.subr.bf16.mxu0 0
    %187 = vmatpush1.bf16.msra.mxu0 %v174
    %188 = vmatprep.subr.bf16.mxu0 0
    %189 = vmatpush1.bf16.msra.mxu0 %v173
    %190 = vmatprep.subr.bf16.mxu0 0
    %191 = vmatpush1.bf16.msra.mxu0 %v172
    %192 = vmatprep.subr.bf16.mxu0 0
    %193 = vmatpush1.bf16.msra.mxu0 %v171
    %194 = vmatprep.subr.bf16.mxu0 0
    %195 = vmatpush1.bf16.msra.mxu0 %v170
    %196 = vmatprep.subr.bf16.mxu0 0
    %197 = vmatpush1.bf16.msra.mxu0 %v169
    %198 = vmatprep.subr.bf16.mxu0 0
    %199 = vmatpush1.bf16.msra.mxu0 %v168
    %200 = vmatprep.subr.bf16.mxu0 0
    %201 = vmatpush2.bf16.msra.mxu0 0
    %202 = vmatprep.subr.bf16.mxu0 0
    %203 = vmatpush2.bf16.msra.mxu0 0
    %204 = vmatprep.subr.bf16.mxu0 0
    %205 = vmatpush2.bf16.msra.mxu0 0
    %206 = vmatprep.subr.bf16.mxu0 0
    %207 = vmatpush2.bf16.msra.mxu0 0
    %208 = vmatprep.subr.bf16.mxu0 0
    %209 = vmatpush2.bf16.msra.mxu0 0
    %210 = vmatprep.subr.bf16.mxu0 0
    %211 = vmatpush2.bf16.msra.mxu0 0
    %212 = vmatprep.subr.bf16.mxu0 0
    %213 = vmatpush2.bf16.msra.mxu0 0
    %214 = vmatprep.subr.bf16.mxu0 0
    %215 = vmatpush2.bf16.msra.mxu0 0
    %216 = vmatprep.mubr.bf16.mxu0 0
    %217 = vmatmul.mubr.bf16.gmra.mxu0 %v120
    %v218 = vpop.f32.mrf.mxu0
    %v219 = vadd.f32 0.0, %v218
    %v220 = vpop.f32.mrf.mxu0
    %v221 = vpop.f32.mrf.mxu0
    %v222 = vadd.f32 0.0, %v221
    %v223 = vpop.f32.mrf.mxu0
    %224 = vmatprep.mubr.bf16.mxu0 0
    %225 = vmatmul.mubr.bf16.gmra.mxu0 %v121
    %v226 = vpop.f32.mrf.mxu0
    %v227 = vadd.f32 0.0, %v226
    %v228 = vpop.f32.mrf.mxu0
    %v229 = vpop.f32.mrf.mxu0
    %v230 = vadd.f32 0.0, %v229
    %v231 = vpop.f32.mrf.mxu0
    %232 = vmatprep.mubr.bf16.mxu0 0
    %233 = vmatmul.mubr.bf16.gmra.mxu0 %v122
    %v234 = vpop.f32.mrf.mxu0
    %v235 = vadd.f32 0.0, %v234
    %v236 = vpop.f32.mrf.mxu0
    %v237 = vpop.f32.mrf.mxu0
    %v238 = vadd.f32 0.0, %v237
    %v239 = vpop.f32.mrf.mxu0
    %240 = vmatprep.mubr.bf16.mxu0 0
    %241 = vmatmul.mubr.bf16.gmra.mxu0 %v123
    %v242 = vpop.f32.mrf.mxu0
    %v243 = vadd.f32 0.0, %v242
    %v244 = vpop.f32.mrf.mxu0
    %v245 = vpop.f32.mrf.mxu0
    %v246 = vadd.f32 0.0, %v245
    %v247 = vpop.f32.mrf.mxu0
    %248 = vmatprep.mubr.bf16.mxu0 0
    %249 = vmatmul.mubr.bf16.gmra.mxu0 %v124
    %v250 = vpop.f32.mrf.mxu0
    %v251 = vadd.f32 0.0, %v250
    %v252 = vpop.f32.mrf.mxu0
    %v253 = vpop.f32.mrf.mxu0
    %v254 = vadd.f32 0.0, %v253
    %v255 = vpop.f32.mrf.mxu0
    %256 = vmatprep.mubr.bf16.mxu0 0
    %257 = vmatmul.mubr.bf16.gmra.mxu0 %v125
    %v258 = vpop.f32.mrf.mxu0
    %v259 = vadd.f32 0.0, %v258
    %v260 = vpop.f32.mrf.mxu0
    %v261 = vpop.f32.mrf.mxu0
    %v262 = vadd.f32 0.0, %v261
    %v263 = vpop.f32.mrf.mxu0
    %264 = vmatprep.mubr.bf16.mxu0 0
    %265 = vmatmul.mubr.bf16.gmra.mxu0 %v126
    %v266 = vpop.f32.mrf.mxu0
    %v267 = vadd.f32 0.0, %v266
    %v268 = vpop.f32.mrf.mxu0
    %v269 = vpop.f32.mrf.mxu0
    %v270 = vadd.f32 0.0, %v269
    %v271 = vpop.f32.mrf.mxu0
    %272 = vmatprep.mubr.bf16.mxu0 0
    %273 = vmatmul.mubr.bf16.gmra.mxu0 %v127
    %v274 = vpop.f32.mrf.mxu0
    %v275 = vadd.f32 0.0, %v274
    %v276 = vpop.f32.mrf.mxu0
    %v277 = vpop.f32.mrf.mxu0
    %v278 = vadd.f32 0.0, %v277
    %v279 = vpop.f32.mrf.mxu0
    %280 = vdwg.mxu0
    %v281 = vpack.c.bf16 %v222, %v219
    %v282 = vpack.c.bf16 %v230, %v227
    %v283 = vpack.c.bf16 %v238, %v235
    %v284 = vpack.c.bf16 %v246, %v243
    %v285 = vpack.c.bf16 %v254, %v251
    %v286 = vpack.c.bf16 %v262, %v259
    %v287 = vpack.c.bf16 %v270, %v267
    %v288 = vpack.c.bf16 %v278, %v275
    %v289 = vld [vmem:[%s5] sm:$0xff]
    %v290 = vld [vmem:[%s5 + $0x8] sm:$0xff]
    %v291 = vld [vmem:[%s5 + $0x10] sm:$0xff]
    %v292 = vld [vmem:[%s5 + $0x18] sm:$0xff]
    %v293 = vld [vmem:[%s5 + $0x20] sm:$0xff]
    %v294 = vld [vmem:[%s5 + $0x28] sm:$0xff]
    %v295 = vld [vmem:[%s5 + $0x30] sm:$0xff]
    %v296 = vld [vmem:[%s5 + $0x38] sm:$0xff]
    %v297 = vld [vmem:[%s5 + $0x40] sm:$0xff]
    %v298 = vld [vmem:[%s5 + $0x48] sm:$0xff]
    %v299 = vld [vmem:[%s5 + $0x50] sm:$0xff]
    %v300 = vld [vmem:[%s5 + $0x58] sm:$0xff]
    %v301 = vld [vmem:[%s5 + $0x60] sm:$0xff]
    %v302 = vld [vmem:[%s5 + $0x68] sm:$0xff]
    %v303 = vld [vmem:[%s5 + $0x70] sm:$0xff]
    %v304 = vld [vmem:[%s5 + $0x78] sm:$0xff]
    %306 = vset.pattern.permute.xlu0 0
    %307 = vperm.xlu0 %306, %v289
    %v308 = vpop.permute.xlu0 %307
    %311 = vset.pattern.permute.xlu0 0
    %312 = vperm.xlu0 %311, %v290
    %v313 = vpop.permute.xlu0 %312
    %316 = vset.pattern.permute.xlu0 0
    %317 = vperm.xlu0 %316, %v291
    %v318 = vpop.permute.xlu0 %317
    %321 = vset.pattern.permute.xlu0 0
    %322 = vperm.xlu0 %321, %v292
    %v323 = vpop.permute.xlu0 %322
    %326 = vset.pattern.permute.xlu0 0
    %327 = vperm.xlu0 %326, %v293
    %v328 = vpop.permute.xlu0 %327
    %331 = vset.pattern.permute.xlu0 0
    %332 = vperm.xlu0 %331, %v294
    %v333 = vpop.permute.xlu0 %332
    %336 = vset.pattern.permute.xlu0 0
    %337 = vperm.xlu0 %336, %v295
    %v338 = vpop.permute.xlu0 %337
    %341 = vset.pattern.permute.xlu0 0
    %342 = vperm.xlu0 %341, %v296
    %v343 = vpop.permute.xlu0 %342
    %346 = vset.pattern.permute.xlu0 0
    %347 = vperm.xlu0 %346, %v297
    %v348 = vpop.permute.xlu0 %347
    %351 = vset.pattern.permute.xlu0 0
    %352 = vperm.xlu0 %351, %v298
    %v353 = vpop.permute.xlu0 %352
    %356 = vset.pattern.permute.xlu0 0
    %357 = vperm.xlu0 %356, %v299
    %v358 = vpop.permute.xlu0 %357
    %361 = vset.pattern.permute.xlu0 0
    %362 = vperm.xlu0 %361, %v300
    %v363 = vpop.permute.xlu0 %362
    %366 = vset.pattern.permute.xlu0 0
    %367 = vperm.xlu0 %366, %v301
    %v368 = vpop.permute.xlu0 %367
    %371 = vset.pattern.permute.xlu0 0
    %372 = vperm.xlu0 %371, %v302
    %v373 = vpop.permute.xlu0 %372
    %376 = vset.pattern.permute.xlu0 0
    %377 = vperm.xlu0 %376, %v303
    %v378 = vpop.permute.xlu0 %377
    %381 = vset.pattern.permute.xlu0 0
    %382 = vperm.xlu0 %381, %v304
    %v383 = vpop.permute.xlu0 %382
    %v401 = vunpack.c.l.b16 %v40
    %v402 = vunpack.c.l.b16 %v41
    %v403 = vunpack.c.l.b16 %v42
    %v404 = vunpack.c.l.b16 %v43
    %v405 = vunpack.c.l.b16 %v44
    %v406 = vunpack.c.l.b16 %v45
    %v407 = vunpack.c.l.b16 %v46
    %v408 = vunpack.c.l.b16 %v47
    %v409 = vunpack.c.l.b16 %v48
    %v410 = vunpack.c.l.b16 %v49
    %v411 = vunpack.c.l.b16 %v50
    %v412 = vunpack.c.l.b16 %v51
    %v413 = vunpack.c.l.b16 %v52
    %v414 = vunpack.c.l.b16 %v53
    %v415 = vunpack.c.l.b16 %v54
    %v416 = vunpack.c.l.b16 %v55
    %v417 = vpack.c.b16 %v402, %v401
    %v418 = vpack.c.b16 %v404, %v403
    %v419 = vpack.c.b16 %v406, %v405
    %v420 = vpack.c.b16 %v408, %v407
    %v421 = vpack.c.b16 %v410, %v409
    %v422 = vpack.c.b16 %v412, %v411
    %v423 = vpack.c.b16 %v414, %v413
    %v424 = vpack.c.b16 %v416, %v415
    %433 = vmatprep.subr.bf16.mxu0 0
    %434 = vmatpush1.bf16.msra.mxu0 %v424
    %435 = vmatprep.subr.bf16.mxu0 0
    %436 = vmatpush1.bf16.msra.mxu0 %v423
    %437 = vmatprep.subr.bf16.mxu0 0
    %438 = vmatpush1.bf16.msra.mxu0 %v422
    %439 = vmatprep.subr.bf16.mxu0 0
    %440 = vmatpush1.bf16.msra.mxu0 %v421
    %441 = vmatprep.subr.bf16.mxu0 0
    %442 = vmatpush1.bf16.msra.mxu0 %v420
    %443 = vmatprep.subr.bf16.mxu0 0
    %444 = vmatpush1.bf16.msra.mxu0 %v419
    %445 = vmatprep.subr.bf16.mxu0 0
    %446 = vmatpush1.bf16.msra.mxu0 %v418
    %447 = vmatprep.subr.bf16.mxu0 0
    %448 = vmatpush1.bf16.msra.mxu0 %v417
    %449 = vmatprep.subr.bf16.mxu0 0
    %450 = vmatpush2.bf16.msra.mxu0 0
    %451 = vmatprep.subr.bf16.mxu0 0
    %452 = vmatpush2.bf16.msra.mxu0 0
    %453 = vmatprep.subr.bf16.mxu0 0
    %454 = vmatpush2.bf16.msra.mxu0 0
    %455 = vmatprep.subr.bf16.mxu0 0
    %456 = vmatpush2.bf16.msra.mxu0 0
    %457 = vmatprep.subr.bf16.mxu0 0
    %458 = vmatpush2.bf16.msra.mxu0 0
    %459 = vmatprep.subr.bf16.mxu0 0
    %460 = vmatpush2.bf16.msra.mxu0 0
    %461 = vmatprep.subr.bf16.mxu0 0
    %462 = vmatpush2.bf16.msra.mxu0 0
    %463 = vmatprep.subr.bf16.mxu0 0
    %464 = vmatpush2.bf16.msra.mxu0 0
    %465 = vmatprep.mubr.bf16.mxu0 0
    %466 = vmatmul.mubr.bf16.gmra.mxu0 %v281
    %v467 = vpop.f32.mrf.mxu0
    %v468 = vadd.f32 %v308, %v467
    %v469 = vpop.f32.mrf.mxu0
    %v470 = vpop.f32.mrf.mxu0
    %v471 = vadd.f32 %v313, %v470
    %v472 = vpop.f32.mrf.mxu0
    %473 = vmatprep.mubr.bf16.mxu0 0
    %474 = vmatmul.mubr.bf16.gmra.mxu0 %v282
    %v475 = vpop.f32.mrf.mxu0
    %v476 = vadd.f32 %v318, %v475
    %v477 = vpop.f32.mrf.mxu0
    %v478 = vpop.f32.mrf.mxu0
    %v479 = vadd.f32 %v323, %v478
    %v480 = vpop.f32.mrf.mxu0
    %481 = vmatprep.mubr.bf16.mxu0 0
    %482 = vmatmul.mubr.bf16.gmra.mxu0 %v283
    %v483 = vpop.f32.mrf.mxu0
    %v484 = vadd.f32 %v328, %v483
    %v485 = vpop.f32.mrf.mxu0
    %v486 = vpop.f32.mrf.mxu0
    %v487 = vadd.f32 %v333, %v486
    %v488 = vpop.f32.mrf.mxu0
    %489 = vmatprep.mubr.bf16.mxu0 0
    %490 = vmatmul.mubr.bf16.gmra.mxu0 %v284
    %v491 = vpop.f32.mrf.mxu0
    %v492 = vadd.f32 %v338, %v491
    %v493 = vpop.f32.mrf.mxu0
    %v494 = vpop.f32.mrf.mxu0
    %v495 = vadd.f32 %v343, %v494
    %v496 = vpop.f32.mrf.mxu0
    %497 = vmatprep.mubr.bf16.mxu0 0
    %498 = vmatmul.mubr.bf16.gmra.mxu0 %v285
    %v499 = vpop.f32.mrf.mxu0
    %v500 = vadd.f32 %v348, %v499
    %v501 = vpop.f32.mrf.mxu0
    %v502 = vpop.f32.mrf.mxu0
    %v503 = vadd.f32 %v353, %v502
    %v504 = vpop.f32.mrf.mxu0
    %505 = vmatprep.mubr.bf16.mxu0 0
    %506 = vmatmul.mubr.bf16.gmra.mxu0 %v286
    %v507 = vpop.f32.mrf.mxu0
    %v508 = vadd.f32 %v358, %v507
    %v509 = vpop.f32.mrf.mxu0
    %v510 = vpop.f32.mrf.mxu0
    %v511 = vadd.f32 %v363, %v510
    %v512 = vpop.f32.mrf.mxu0
    %513 = vmatprep.mubr.bf16.mxu0 0
    %514 = vmatmul.mubr.bf16.gmra.mxu0 %v287
    %v515 = vpop.f32.mrf.mxu0
    %v516 = vadd.f32 %v368, %v515
    %v517 = vpop.f32.mrf.mxu0
    %v518 = vpop.f32.mrf.mxu0
    %v519 = vadd.f32 %v373, %v518
    %v520 = vpop.f32.mrf.mxu0
    %521 = vmatprep.mubr.bf16.mxu0 0
    %522 = vmatmul.mubr.bf16.gmra.mxu0 %v288
    %v523 = vpop.f32.mrf.mxu0
    %v524 = vadd.f32 %v378, %v523
    %v525 = vpop.f32.mrf.mxu0
    %v526 = vpop.f32.mrf.mxu0
    %v527 = vadd.f32 %v383, %v526
    %v528 = vpop.f32.mrf.mxu0
    %529 = vdwg.mxu0
    %v530 = vmax.f32 %v468, 0.0
    %v531 = vmax.f32 %v471, 0.0
    %v532 = vmax.f32 %v476, 0.0
    %v533 = vmax.f32 %v479, 0.0
    %v534 = vmax.f32 %v484, 0.0
    %v535 = vmax.f32 %v487, 0.0
    %v536 = vmax.f32 %v492, 0.0
    %v537 = vmax.f32 %v495, 0.0
    %v538 = vmax.f32 %v500, 0.0
    %v539 = vmax.f32 %v503, 0.0
    %v540 = vmax.f32 %v508, 0.0
    %v541 = vmax.f32 %v511, 0.0
    %v542 = vmax.f32 %v516, 0.0
    %v543 = vmax.f32 %v519, 0.0
    %v544 = vmax.f32 %v524, 0.0
    %v545 = vmax.f32 %v527, 0.0
    %v546 = vpack.c.bf16 %v531, %v530
    %v547 = vpack.c.bf16 %v533, %v532
    %v548 = vpack.c.bf16 %v535, %v534
    %v549 = vpack.c.bf16 %v537, %v536
    %v550 = vpack.c.bf16 %v539, %v538
    %v551 = vpack.c.bf16 %v541, %v540
    %v552 = vpack.c.bf16 %v543, %v542
    %v553 = vpack.c.bf16 %v545, %v544
    %v554 = vld [vmem:[%s6] sm:$0xf]
    %v555 = vld [vmem:[%s6 + $0x4] sm:$0xf]
    %v556 = vld [vmem:[%s6 + $0x8] sm:$0xf]
    %v557 = vld [vmem:[%s6 + $0xc] sm:$0xf]
    %v558 = vld [vmem:[%s6 + $0x10] sm:$0xf]
    %v559 = vld [vmem:[%s6 + $0x14] sm:$0xf]
    %v560 = vld [vmem:[%s6 + $0x18] sm:$0xf]
    %v561 = vld [vmem:[%s6 + $0x1c] sm:$0xf]
    %v562 = vld [vmem:[%s6 + $0x20] sm:$0xf]
    %v563 = vld [vmem:[%s6 + $0x24] sm:$0xf]
    %v564 = vld [vmem:[%s6 + $0x28] sm:$0xf]
    %v565 = vld [vmem:[%s6 + $0x2c] sm:$0xf]
    %v566 = vld [vmem:[%s6 + $0x30] sm:$0xf]
    %v567 = vld [vmem:[%s6 + $0x34] sm:$0xf]
    %v568 = vld [vmem:[%s6 + $0x38] sm:$0xf]
    %v569 = vld [vmem:[%s6 + $0x3c] sm:$0xf]
    %v586 = vunpack.c.l.b16 %v554
    %v587 = vunpack.c.l.b16 %v555
    %v588 = vunpack.c.l.b16 %v556
    %v589 = vunpack.c.l.b16 %v557
    %v590 = vunpack.c.l.b16 %v558
    %v591 = vunpack.c.l.b16 %v559
    %v592 = vunpack.c.l.b16 %v560
    %v593 = vunpack.c.l.b16 %v561
    %v594 = vunpack.c.l.b16 %v562
    %v595 = vunpack.c.l.b16 %v563
    %v596 = vunpack.c.l.b16 %v564
    %v597 = vunpack.c.l.b16 %v565
    %v598 = vunpack.c.l.b16 %v566
    %v599 = vunpack.c.l.b16 %v567
    %v600 = vunpack.c.l.b16 %v568
    %v601 = vunpack.c.l.b16 %v569
    %v602 = vpack.c.b16 %v587, %v586
    %v603 = vpack.c.b16 %v589, %v588
    %v604 = vpack.c.b16 %v591, %v590
    %v605 = vpack.c.b16 %v593, %v592
    %v606 = vpack.c.b16 %v595, %v594
    %v607 = vpack.c.b16 %v597, %v596
    %v608 = vpack.c.b16 %v599, %v598
    %v609 = vpack.c.b16 %v601, %v600
    %618 = vmatprep.subr.bf16.mxu0 0
    %619 = vmatpush1.bf16.msra.mxu0 %v553
    %620 = vmatprep.subr.bf16.mxu0 0
    %621 = vmatpush1.bf16.msra.mxu0 %v552
    %622 = vmatprep.subr.bf16.mxu0 0
    %623 = vmatpush1.bf16.msra.mxu0 %v551
    %624 = vmatprep.subr.bf16.mxu0 0
    %625 = vmatpush1.bf16.msra.mxu0 %v550
    %626 = vmatprep.subr.bf16.mxu0 0
    %627 = vmatpush1.bf16.msra.mxu0 %v549
    %628 = vmatprep.subr.bf16.mxu0 0
    %629 = vmatpush1.bf16.msra.mxu0 %v548
    %630 = vmatprep.subr.bf16.mxu0 0
    %631 = vmatpush1.bf16.msra.mxu0 %v547
    %632 = vmatprep.subr.bf16.mxu0 0
    %633 = vmatpush1.bf16.msra.mxu0 %v546
    %634 = vmatprep.subr.bf16.mxu0 0
    %635 = vmatpush2.bf16.msra.mxu0 0
    %636 = vmatprep.subr.bf16.mxu0 0
    %637 = vmatpush2.bf16.msra.mxu0 0
    %638 = vmatprep.subr.bf16.mxu0 0
    %639 = vmatpush2.bf16.msra.mxu0 0
    %640 = vmatprep.subr.bf16.mxu0 0
    %641 = vmatpush2.bf16.msra.mxu0 0
    %642 = vmatprep.subr.bf16.mxu0 0
    %643 = vmatpush2.bf16.msra.mxu0 0
    %644 = vmatprep.subr.bf16.mxu0 0
    %645 = vmatpush2.bf16.msra.mxu0 0
    %646 = vmatprep.subr.bf16.mxu0 0
    %647 = vmatpush2.bf16.msra.mxu0 0
    %648 = vmatprep.subr.bf16.mxu0 0
    %649 = vmatpush2.bf16.msra.mxu0 0
    %650 = vmatprep.mubr.bf16.mxu0 0
    %651 = vmatmul.mubr.bf16.gmra.mxu0 %v602
    %v652 = vpop.f32.mrf.mxu0
    %v653 = vadd.f32 0.0, %v652
    %v654 = vpop.f32.mrf.mxu0
    %v655 = vpop.f32.mrf.mxu0
    %v656 = vadd.f32 0.0, %v655
    %v657 = vpop.f32.mrf.mxu0
    %658 = vmatprep.mubr.bf16.mxu0 0
    %659 = vmatmul.mubr.bf16.gmra.mxu0 %v603
    %v660 = vpop.f32.mrf.mxu0
    %v661 = vadd.f32 0.0, %v660
    %v662 = vpop.f32.mrf.mxu0
    %v663 = vpop.f32.mrf.mxu0
    %v664 = vadd.f32 0.0, %v663
    %v665 = vpop.f32.mrf.mxu0
    %666 = vmatprep.mubr.bf16.mxu0 0
    %667 = vmatmul.mubr.bf16.gmra.mxu0 %v604
    %v668 = vpop.f32.mrf.mxu0
    %v669 = vadd.f32 0.0, %v668
    %v670 = vpop.f32.mrf.mxu0
    %v671 = vpop.f32.mrf.mxu0
    %v672 = vadd.f32 0.0, %v671
    %v673 = vpop.f32.mrf.mxu0
    %674 = vmatprep.mubr.bf16.mxu0 0
    %675 = vmatmul.mubr.bf16.gmra.mxu0 %v605
    %v676 = vpop.f32.mrf.mxu0
    %v677 = vadd.f32 0.0, %v676
    %v678 = vpop.f32.mrf.mxu0
    %v679 = vpop.f32.mrf.mxu0
    %v680 = vadd.f32 0.0, %v679
    %v681 = vpop.f32.mrf.mxu0
    %682 = vmatprep.mubr.bf16.mxu0 0
    %683 = vmatmul.mubr.bf16.gmra.mxu0 %v606
    %v684 = vpop.f32.mrf.mxu0
    %v685 = vadd.f32 0.0, %v684
    %v686 = vpop.f32.mrf.mxu0
    %v687 = vpop.f32.mrf.mxu0
    %v688 = vadd.f32 0.0, %v687
    %v689 = vpop.f32.mrf.mxu0
    %690 = vmatprep.mubr.bf16.mxu0 0
    %691 = vmatmul.mubr.bf16.gmra.mxu0 %v607
    %v692 = vpop.f32.mrf.mxu0
    %v693 = vadd.f32 0.0, %v692
    %v694 = vpop.f32.mrf.mxu0
    %v695 = vpop.f32.mrf.mxu0
    %v696 = vadd.f32 0.0, %v695
    %v697 = vpop.f32.mrf.mxu0
    %698 = vmatprep.mubr.bf16.mxu0 0
    %699 = vmatmul.mubr.bf16.gmra.mxu0 %v608
    %v700 = vpop.f32.mrf.mxu0
    %v701 = vadd.f32 0.0, %v700
    %v702 = vpop.f32.mrf.mxu0
    %v703 = vpop.f32.mrf.mxu0
    %v704 = vadd.f32 0.0, %v703
    %v705 = vpop.f32.mrf.mxu0
    %706 = vmatprep.mubr.bf16.mxu0 0
    %707 = vmatmul.mubr.bf16.gmra.mxu0 %v609
    %v708 = vpop.f32.mrf.mxu0
    %v709 = vadd.f32 0.0, %v708
    %v710 = vpop.f32.mrf.mxu0
    %v711 = vpop.f32.mrf.mxu0
    %v712 = vadd.f32 0.0, %v711
    %v713 = vpop.f32.mrf.mxu0
    %714 = vdwg.mxu0
    %v715 = vpack.c.bf16 %v656, %v653
    %v716 = vpack.c.bf16 %v664, %v661
    %v717 = vpack.c.bf16 %v672, %v669
    %v718 = vpack.c.bf16 %v680, %v677
    %v719 = vpack.c.bf16 %v688, %v685
    %v720 = vpack.c.bf16 %v696, %v693
    %v721 = vpack.c.bf16 %v704, %v701
    %v722 = vpack.c.bf16 %v712, %v709
    %v723 = vld [vmem:[%s7] sm:$0xff]
    %v724 = vld [vmem:[%s7 + $0x8] sm:$0xff]
    %v725 = vld [vmem:[%s7 + $0x10] sm:$0xff]
    %v726 = vld [vmem:[%s7 + $0x18] sm:$0xff]
    %v727 = vld [vmem:[%s7 + $0x20] sm:$0xff]
    %v728 = vld [vmem:[%s7 + $0x28] sm:$0xff]
    %v729 = vld [vmem:[%s7 + $0x30] sm:$0xff]
    %v730 = vld [vmem:[%s7 + $0x38] sm:$0xff]
    %v731 = vld [vmem:[%s7 + $0x40] sm:$0xff]
    %v732 = vld [vmem:[%s7 + $0x48] sm:$0xff]
    %v733 = vld [vmem:[%s7 + $0x50] sm:$0xff]
    %v734 = vld [vmem:[%s7 + $0x58] sm:$0xff]
    %v735 = vld [vmem:[%s7 + $0x60] sm:$0xff]
    %v736 = vld [vmem:[%s7 + $0x68] sm:$0xff]
    %v737 = vld [vmem:[%s7 + $0x70] sm:$0xff]
    %v738 = vld [vmem:[%s7 + $0x78] sm:$0xff]
    %740 = vset.pattern.permute.xlu0 0
    %741 = vperm.xlu0 %740, %v723
    %v742 = vpop.permute.xlu0 %741
    %745 = vset.pattern.permute.xlu0 0
    %746 = vperm.xlu0 %745, %v724
    %v747 = vpop.permute.xlu0 %746
    %750 = vset.pattern.permute.xlu0 0
    %751 = vperm.xlu0 %750, %v725
    %v752 = vpop.permute.xlu0 %751
    %755 = vset.pattern.permute.xlu0 0
    %756 = vperm.xlu0 %755, %v726
    %v757 = vpop.permute.xlu0 %756
    %760 = vset.pattern.permute.xlu0 0
    %761 = vperm.xlu0 %760, %v727
    %v762 = vpop.permute.xlu0 %761
    %765 = vset.pattern.permute.xlu0 0
    %766 = vperm.xlu0 %765, %v728
    %v767 = vpop.permute.xlu0 %766
    %770 = vset.pattern.permute.xlu0 0
    %771 = vperm.xlu0 %770, %v729
    %v772 = vpop.permute.xlu0 %771
    %775 = vset.pattern.permute.xlu0 0
    %776 = vperm.xlu0 %775, %v730
    %v777 = vpop.permute.xlu0 %776
    %780 = vset.pattern.permute.xlu0 0
    %781 = vperm.xlu0 %780, %v731
    %v782 = vpop.permute.xlu0 %781
    %785 = vset.pattern.permute.xlu0 0
    %786 = vperm.xlu0 %785, %v732
    %v787 = vpop.permute.xlu0 %786
    %790 = vset.pattern.permute.xlu0 0
    %791 = vperm.xlu0 %790, %v733
    %v792 = vpop.permute.xlu0 %791
    %795 = vset.pattern.permute.xlu0 0
    %796 = vperm.xlu0 %795, %v734
    %v797 = vpop.permute.xlu0 %796
    %800 = vset.pattern.permute.xlu0 0
    %801 = vperm.xlu0 %800, %v735
    %v802 = vpop.permute.xlu0 %801
    %805 = vset.pattern.permute.xlu0 0
    %806 = vperm.xlu0 %805, %v736
    %v807 = vpop.permute.xlu0 %806
    %810 = vset.pattern.permute.xlu0 0
    %811 = vperm.xlu0 %810, %v737
    %v812 = vpop.permute.xlu0 %811
    %815 = vset.pattern.permute.xlu0 0
    %816 = vperm.xlu0 %815, %v738
    %v817 = vpop.permute.xlu0 %816
    %819 = vmatprep.subr.bf16.mxu0 0
    %820 = vmatpush1.bf16.msra.mxu0 %v424
    %821 = vmatprep.subr.bf16.mxu0 0
    %822 = vmatpush1.bf16.msra.mxu0 %v423
    %823 = vmatprep.subr.bf16.mxu0 0
    %824 = vmatpush1.bf16.msra.mxu0 %v422
    %825 = vmatprep.subr.bf16.mxu0 0
    %826 = vmatpush1.bf16.msra.mxu0 %v421
    %827 = vmatprep.subr.bf16.mxu0 0
    %828 = vmatpush1.bf16.msra.mxu0 %v420
    %829 = vmatprep.subr.bf16.mxu0 0
    %830 = vmatpush1.bf16.msra.mxu0 %v419
    %831 = vmatprep.subr.bf16.mxu0 0
    %832 = vmatpush1.bf16.msra.mxu0 %v418
    %833 = vmatprep.subr.bf16.mxu0 0
    %834 = vmatpush1.bf16.msra.mxu0 %v417
    %835 = vmatprep.subr.bf16.mxu0 0
    %836 = vmatpush2.bf16.msra.mxu0 0
    %837 = vmatprep.subr.bf16.mxu0 0
    %838 = vmatpush2.bf16.msra.mxu0 0
    %839 = vmatprep.subr.bf16.mxu0 0
    %840 = vmatpush2.bf16.msra.mxu0 0
    %841 = vmatprep.subr.bf16.mxu0 0
    %842 = vmatpush2.bf16.msra.mxu0 0
    %843 = vmatprep.subr.bf16.mxu0 0
    %844 = vmatpush2.bf16.msra.mxu0 0
    %845 = vmatprep.subr.bf16.mxu0 0
    %846 = vmatpush2.bf16.msra.mxu0 0
    %847 = vmatprep.subr.bf16.mxu0 0
    %848 = vmatpush2.bf16.msra.mxu0 0
    %849 = vmatprep.subr.bf16.mxu0 0
    %850 = vmatpush2.bf16.msra.mxu0 0
    %851 = vmatprep.mubr.bf16.mxu0 0
    %852 = vmatmul.mubr.bf16.gmra.mxu0 %v715
    %v853 = vpop.f32.mrf.mxu0
    %v854 = vadd.f32 %v742, %v853
    %v855 = vpop.f32.mrf.mxu0
    %v856 = vpop.f32.mrf.mxu0
    %v857 = vadd.f32 %v747, %v856
    %v858 = vpop.f32.mrf.mxu0
    %859 = vmatprep.mubr.bf16.mxu0 0
    %860 = vmatmul.mubr.bf16.gmra.mxu0 %v716
    %v861 = vpop.f32.mrf.mxu0
    %v862 = vadd.f32 %v752, %v861
    %v863 = vpop.f32.mrf.mxu0
    %v864 = vpop.f32.mrf.mxu0
    %v865 = vadd.f32 %v757, %v864
    %v866 = vpop.f32.mrf.mxu0
    %867 = vmatprep.mubr.bf16.mxu0 0
    %868 = vmatmul.mubr.bf16.gmra.mxu0 %v717
    %v869 = vpop.f32.mrf.mxu0
    %v870 = vadd.f32 %v762, %v869
    %v871 = vpop.f32.mrf.mxu0
    %v872 = vpop.f32.mrf.mxu0
    %v873 = vadd.f32 %v767, %v872
    %v874 = vpop.f32.mrf.mxu0
    %875 = vmatprep.mubr.bf16.mxu0 0
    %876 = vmatmul.mubr.bf16.gmra.mxu0 %v718
    %v877 = vpop.f32.mrf.mxu0
    %v878 = vadd.f32 %v772, %v877
    %v879 = vpop.f32.mrf.mxu0
    %v880 = vpop.f32.mrf.mxu0
    %v881 = vadd.f32 %v777, %v880
    %v882 = vpop.f32.mrf.mxu0
    %883 = vmatprep.mubr.bf16.mxu0 0
    %884 = vmatmul.mubr.bf16.gmra.mxu0 %v719
    %v885 = vpop.f32.mrf.mxu0
    %v886 = vadd.f32 %v782, %v885
    %v887 = vpop.f32.mrf.mxu0
    %v888 = vpop.f32.mrf.mxu0
    %v889 = vadd.f32 %v787, %v888
    %v890 = vpop.f32.mrf.mxu0
    %891 = vmatprep.mubr.bf16.mxu0 0
    %892 = vmatmul.mubr.bf16.gmra.mxu0 %v720
    %v893 = vpop.f32.mrf.mxu0
    %v894 = vadd.f32 %v792, %v893
    %v895 = vpop.f32.mrf.mxu0
    %v896 = vpop.f32.mrf.mxu0
    %v897 = vadd.f32 %v797, %v896
    %v898 = vpop.f32.mrf.mxu0
    %899 = vmatprep.mubr.bf16.mxu0 0
    %900 = vmatmul.mubr.bf16.gmra.mxu0 %v721
    %v901 = vpop.f32.mrf.mxu0
    %v902 = vadd.f32 %v802, %v901
    %v903 = vpop.f32.mrf.mxu0
    %v904 = vpop.f32.mrf.mxu0
    %v905 = vadd.f32 %v807, %v904
    %v906 = vpop.f32.mrf.mxu0
    %907 = vmatprep.mubr.bf16.mxu0 0
    %908 = vmatmul.mubr.bf16.gmra.mxu0 %v722
    %v909 = vpop.f32.mrf.mxu0
    %v910 = vadd.f32 %v812, %v909
    %v911 = vpop.f32.mrf.mxu0
    %v912 = vpop.f32.mrf.mxu0
    %v913 = vadd.f32 %v817, %v912
    %v914 = vpop.f32.mrf.mxu0
    %915 = vdwg.mxu0
    %v916 = vmax.f32 %v854, 0.0
    %v917 = vmax.f32 %v857, 0.0
    %v918 = vmax.f32 %v862, 0.0
    %v919 = vmax.f32 %v865, 0.0
    %v920 = vmax.f32 %v870, 0.0
    %v921 = vmax.f32 %v873, 0.0
    %v922 = vmax.f32 %v878, 0.0
    %v923 = vmax.f32 %v881, 0.0
    %v924 = vmax.f32 %v886, 0.0
    %v925 = vmax.f32 %v889, 0.0
    %v926 = vmax.f32 %v894, 0.0
    %v927 = vmax.f32 %v897, 0.0
    %v928 = vmax.f32 %v902, 0.0
    %v929 = vmax.f32 %v905, 0.0
    %v930 = vmax.f32 %v910, 0.0
    %v931 = vmax.f32 %v913, 0.0
    %v932 = vpack.c.bf16 %v917, %v916
    %v933 = vpack.c.bf16 %v919, %v918
    %v934 = vpack.c.bf16 %v921, %v920
    %v935 = vpack.c.bf16 %v923, %v922
    %v936 = vpack.c.bf16 %v925, %v924
    %v937 = vpack.c.bf16 %v927, %v926
    %v938 = vpack.c.bf16 %v929, %v928
    %v939 = vpack.c.bf16 %v931, %v930
    %v940 = vld [vmem:[%s1] sm:$0x1]
    %v941 = vld [vmem:[%s8] sm:$0xf]
    %v942 = vld [vmem:[%s8 + $0x4] sm:$0xf]
    %v943 = vld [vmem:[%s8 + $0x8] sm:$0xf]
    %v944 = vld [vmem:[%s8 + $0xc] sm:$0xf]
    %v945 = vld [vmem:[%s8 + $0x10] sm:$0xf]
    %v946 = vld [vmem:[%s8 + $0x14] sm:$0xf]
    %v947 = vld [vmem:[%s8 + $0x18] sm:$0xf]
    %v948 = vld [vmem:[%s8 + $0x1c] sm:$0xf]
    %v949 = vld [vmem:[%s8 + $0x20] sm:$0xf]
    %v950 = vld [vmem:[%s8 + $0x24] sm:$0xf]
    %v951 = vld [vmem:[%s8 + $0x28] sm:$0xf]
    %v952 = vld [vmem:[%s8 + $0x2c] sm:$0xf]
    %v953 = vld [vmem:[%s8 + $0x30] sm:$0xf]
    %v954 = vld [vmem:[%s8 + $0x34] sm:$0xf]
    %v955 = vld [vmem:[%s8 + $0x38] sm:$0xf]
    %v956 = vld [vmem:[%s8 + $0x3c] sm:$0xf]
    %v973 = vunpack.c.l.b16 %v941
    %v974 = vunpack.c.l.b16 %v942
    %v975 = vunpack.c.l.b16 %v943
    %v976 = vunpack.c.l.b16 %v944
    %v977 = vunpack.c.l.b16 %v945
    %v978 = vunpack.c.l.b16 %v946
    %v979 = vunpack.c.l.b16 %v947
    %v980 = vunpack.c.l.b16 %v948
    %v981 = vunpack.c.l.b16 %v949
    %v982 = vunpack.c.l.b16 %v950
    %v983 = vunpack.c.l.b16 %v951
    %v984 = vunpack.c.l.b16 %v952
    %v985 = vunpack.c.l.b16 %v953
    %v986 = vunpack.c.l.b16 %v954
    %v987 = vunpack.c.l.b16 %v955
    %v988 = vunpack.c.l.b16 %v956
    %v989 = vpack.c.b16 %v974, %v973
    %v990 = vpack.c.b16 %v976, %v975
    %v991 = vpack.c.b16 %v978, %v977
    %v992 = vpack.c.b16 %v980, %v979
    %v993 = vpack.c.b16 %v982, %v981
    %v994 = vpack.c.b16 %v984, %v983
    %v995 = vpack.c.b16 %v986, %v985
    %v996 = vpack.c.b16 %v988, %v987
    %1005 = vmatprep.subr.bf16.mxu0 0
    %1006 = vmatpush1.bf16.msra.mxu0 %v939
    %1007 = vmatprep.subr.bf16.mxu0 0
    %1008 = vmatpush1.bf16.msra.mxu0 %v938
    %1009 = vmatprep.subr.bf16.mxu0 0
    %1010 = vmatpush1.bf16.msra.mxu0 %v937
    %1011 = vmatprep.subr.bf16.mxu0 0
    %1012 = vmatpush1.bf16.msra.mxu0 %v936
    %1013 = vmatprep.subr.bf16.mxu0 0
    %1014 = vmatpush1.bf16.msra.mxu0 %v935
    %1015 = vmatprep.subr.bf16.mxu0 0
    %1016 = vmatpush1.bf16.msra.mxu0 %v934
    %1017 = vmatprep.subr.bf16.mxu0 0
    %1018 = vmatpush1.bf16.msra.mxu0 %v933
    %1019 = vmatprep.subr.bf16.mxu0 0
    %1020 = vmatpush1.bf16.msra.mxu0 %v932
    %1021 = vmatprep.subr.bf16.mxu0 0
    %1022 = vmatpush2.bf16.msra.mxu0 0
    %1023 = vmatprep.subr.bf16.mxu0 0
    %1024 = vmatpush2.bf16.msra.mxu0 0
    %1025 = vmatprep.subr.bf16.mxu0 0
    %1026 = vmatpush2.bf16.msra.mxu0 0
    %1027 = vmatprep.subr.bf16.mxu0 0
    %1028 = vmatpush2.bf16.msra.mxu0 0
    %1029 = vmatprep.subr.bf16.mxu0 0
    %1030 = vmatpush2.bf16.msra.mxu0 0
    %1031 = vmatprep.subr.bf16.mxu0 0
    %1032 = vmatpush2.bf16.msra.mxu0 0
    %1033 = vmatprep.subr.bf16.mxu0 0
    %1034 = vmatpush2.bf16.msra.mxu0 0
    %1035 = vmatprep.subr.bf16.mxu0 0
    %1036 = vmatpush2.bf16.msra.mxu0 0
    %1037 = vmatprep.mubr.bf16.mxu0 0
    %1038 = vmatmul.mubr.bf16.gmra.mxu0 %v989
    %v1039 = vpop.f32.mrf.mxu0
    %v1040 = vadd.f32 0.0, %v1039
    %v1041 = vpop.f32.mrf.mxu0
    %v1042 = vpop.f32.mrf.mxu0
    %v1043 = vadd.f32 0.0, %v1042
    %v1044 = vpop.f32.mrf.mxu0
    %1045 = vmatprep.mubr.bf16.mxu0 0
    %1046 = vmatmul.mubr.bf16.gmra.mxu0 %v990
    %v1047 = vpop.f32.mrf.mxu0
    %v1048 = vadd.f32 0.0, %v1047
    %v1049 = vpop.f32.mrf.mxu0
    %v1050 = vpop.f32.mrf.mxu0
    %v1051 = vadd.f32 0.0, %v1050
    %v1052 = vpop.f32.mrf.mxu0
    %1053 = vmatprep.mubr.bf16.mxu0 0
    %1054 = vmatmul.mubr.bf16.gmra.mxu0 %v991
    %v1055 = vpop.f32.mrf.mxu0
    %v1056 = vadd.f32 0.0, %v1055
    %v1057 = vpop.f32.mrf.mxu0
    %v1058 = vpop.f32.mrf.mxu0
    %v1059 = vadd.f32 0.0, %v1058
    %v1060 = vpop.f32.mrf.mxu0
    %1061 = vmatprep.mubr.bf16.mxu0 0
    %1062 = vmatmul.mubr.bf16.gmra.mxu0 %v992
    %v1063 = vpop.f32.mrf.mxu0
    %v1064 = vadd.f32 0.0, %v1063
    %v1065 = vpop.f32.mrf.mxu0
    %v1066 = vpop.f32.mrf.mxu0
    %v1067 = vadd.f32 0.0, %v1066
    %v1068 = vpop.f32.mrf.mxu0
    %1069 = vmatprep.mubr.bf16.mxu0 0
    %1070 = vmatmul.mubr.bf16.gmra.mxu0 %v993
    %v1071 = vpop.f32.mrf.mxu0
    %v1072 = vadd.f32 0.0, %v1071
    %v1073 = vpop.f32.mrf.mxu0
    %v1074 = vpop.f32.mrf.mxu0
    %v1075 = vadd.f32 0.0, %v1074
    %v1076 = vpop.f32.mrf.mxu0
    %1077 = vmatprep.mubr.bf16.mxu0 0
    %1078 = vmatmul.mubr.bf16.gmra.mxu0 %v994
    %v1079 = vpop.f32.mrf.mxu0
    %v1080 = vadd.f32 0.0, %v1079
    %v1081 = vpop.f32.mrf.mxu0
    %v1082 = vpop.f32.mrf.mxu0
    %v1083 = vadd.f32 0.0, %v1082
    %v1084 = vpop.f32.mrf.mxu0
    %1085 = vmatprep.mubr.bf16.mxu0 0
    %1086 = vmatmul.mubr.bf16.gmra.mxu0 %v995
    %v1087 = vpop.f32.mrf.mxu0
    %v1088 = vadd.f32 0.0, %v1087
    %v1089 = vpop.f32.mrf.mxu0
    %v1090 = vpop.f32.mrf.mxu0
    %v1091 = vadd.f32 0.0, %v1090
    %v1092 = vpop.f32.mrf.mxu0
    %1093 = vmatprep.mubr.bf16.mxu0 0
    %1094 = vmatmul.mubr.bf16.gmra.mxu0 %v996
    %v1095 = vpop.f32.mrf.mxu0
    %v1096 = vadd.f32 0.0, %v1095
    %v1097 = vpop.f32.mrf.mxu0
    %v1098 = vpop.f32.mrf.mxu0
    %v1099 = vadd.f32 0.0, %v1098
    %v1100 = vpop.f32.mrf.mxu0
    %1101 = vdwg.mxu0
    %v1103 = vlaneseq
    %v1104 = vshrl.u32 %v1103, 7
    %v1105 = vsub.s32 0, %v1104
    %v1106 = vrot.slane %v940, %v1105
    %v1108 = vmul.f32 %v1040, %v1106
    %v1109 = vmul.f32 %v1043, %v1106
    %v1110 = vmul.f32 %v1048, %v1106
    %v1111 = vmul.f32 %v1051, %v1106
    %v1112 = vmul.f32 %v1056, %v1106
    %v1113 = vmul.f32 %v1059, %v1106
    %v1114 = vmul.f32 %v1064, %v1106
    %v1115 = vmul.f32 %v1067, %v1106
    %v1116 = vmul.f32 %v1072, %v1106
    %v1117 = vmul.f32 %v1075, %v1106
    %v1118 = vmul.f32 %v1080, %v1106
    %v1119 = vmul.f32 %v1083, %v1106
    %v1120 = vmul.f32 %v1088, %v1106
    %v1121 = vmul.f32 %v1091, %v1106
    %v1122 = vmul.f32 %v1096, %v1106
    %v1123 = vmul.f32 %v1099, %v1106
    %v1124 = vpack.c.bf16 %v1109, %v1108
    %v1125 = vpack.c.bf16 %v1111, %v1110
    %v1126 = vpack.c.bf16 %v1113, %v1112
    %v1127 = vpack.c.bf16 %v1115, %v1114
    %v1128 = vpack.c.bf16 %v1117, %v1116
    %v1129 = vpack.c.bf16 %v1119, %v1118
    %v1130 = vpack.c.bf16 %v1121, %v1120
    %v1131 = vpack.c.bf16 %v1123, %v1122
    %1132 = vmatprep.subr.bf16.mxu0 0
    %1133 = vmatpush1.bf16.msra.mxu0 %v424
    %1134 = vmatprep.subr.bf16.mxu0 0
    %1135 = vmatpush1.bf16.msra.mxu0 %v423
    %1136 = vmatprep.subr.bf16.mxu0 0
    %1137 = vmatpush1.bf16.msra.mxu0 %v422
    %1138 = vmatprep.subr.bf16.mxu0 0
    %1139 = vmatpush1.bf16.msra.mxu0 %v421
    %1140 = vmatprep.subr.bf16.mxu0 0
    %1141 = vmatpush1.bf16.msra.mxu0 %v420
    %1142 = vmatprep.subr.bf16.mxu0 0
    %1143 = vmatpush1.bf16.msra.mxu0 %v419
    %1144 = vmatprep.subr.bf16.mxu0 0
    %1145 = vmatpush1.bf16.msra.mxu0 %v418
    %1146 = vmatprep.subr.bf16.mxu0 0
    %1147 = vmatpush1.bf16.msra.mxu0 %v417
    %1148 = vmatprep.subr.bf16.mxu0 0
    %1149 = vmatpush2.bf16.msra.mxu0 0
    %1150 = vmatprep.subr.bf16.mxu0 0
    %1151 = vmatpush2.bf16.msra.mxu0 0
    %1152 = vmatprep.subr.bf16.mxu0 0
    %1153 = vmatpush2.bf16.msra.mxu0 0
    %1154 = vmatprep.subr.bf16.mxu0 0
    %1155 = vmatpush2.bf16.msra.mxu0 0
    %1156 = vmatprep.subr.bf16.mxu0 0
    %1157 = vmatpush2.bf16.msra.mxu0 0
    %1158 = vmatprep.subr.bf16.mxu0 0
    %1159 = vmatpush2.bf16.msra.mxu0 0
    %1160 = vmatprep.subr.bf16.mxu0 0
    %1161 = vmatpush2.bf16.msra.mxu0 0
    %1162 = vmatprep.subr.bf16.mxu0 0
    %1163 = vmatpush2.bf16.msra.mxu0 0
    %1164 = vmatprep.mubr.bf16.mxu0 0
    %1165 = vmatmul.mubr.bf16.gmra.mxu0 %v1124
    %v1166 = vpop.f32.mrf.mxu0
    %v1167 = vadd.f32 0.0, %v1166
    %v1168 = vpop.f32.mrf.mxu0
    %v1169 = vpop.f32.mrf.mxu0
    %v1170 = vadd.f32 0.0, %v1169
    %v1171 = vpop.f32.mrf.mxu0
    %1172 = vmatprep.mubr.bf16.mxu0 0
    %1173 = vmatmul.mubr.bf16.gmra.mxu0 %v1125
    %v1174 = vpop.f32.mrf.mxu0
    %v1175 = vadd.f32 0.0, %v1174
    %v1176 = vpop.f32.mrf.mxu0
    %v1177 = vpop.f32.mrf.mxu0
    %v1178 = vadd.f32 0.0, %v1177
    %v1179 = vpop.f32.mrf.mxu0
    %1180 = vmatprep.mubr.bf16.mxu0 0
    %1181 = vmatmul.mubr.bf16.gmra.mxu0 %v1126
    %v1182 = vpop.f32.mrf.mxu0
    %v1183 = vadd.f32 0.0, %v1182
    %v1184 = vpop.f32.mrf.mxu0
    %v1185 = vpop.f32.mrf.mxu0
    %v1186 = vadd.f32 0.0, %v1185
    %v1187 = vpop.f32.mrf.mxu0
    %1188 = vmatprep.mubr.bf16.mxu0 0
    %1189 = vmatmul.mubr.bf16.gmra.mxu0 %v1127
    %v1190 = vpop.f32.mrf.mxu0
    %v1191 = vadd.f32 0.0, %v1190
    %v1192 = vpop.f32.mrf.mxu0
    %v1193 = vpop.f32.mrf.mxu0
    %v1194 = vadd.f32 0.0, %v1193
    %v1195 = vpop.f32.mrf.mxu0
    %1196 = vmatprep.mubr.bf16.mxu0 0
    %1197 = vmatmul.mubr.bf16.gmra.mxu0 %v1128
    %v1198 = vpop.f32.mrf.mxu0
    %v1199 = vadd.f32 0.0, %v1198
    %v1200 = vpop.f32.mrf.mxu0
    %v1201 = vpop.f32.mrf.mxu0
    %v1202 = vadd.f32 0.0, %v1201
    %v1203 = vpop.f32.mrf.mxu0
    %1204 = vmatprep.mubr.bf16.mxu0 0
    %1205 = vmatmul.mubr.bf16.gmra.mxu0 %v1129
    %v1206 = vpop.f32.mrf.mxu0
    %v1207 = vadd.f32 0.0, %v1206
    %v1208 = vpop.f32.mrf.mxu0
    %v1209 = vpop.f32.mrf.mxu0
    %v1210 = vadd.f32 0.0, %v1209
    %v1211 = vpop.f32.mrf.mxu0
    %1212 = vmatprep.mubr.bf16.mxu0 0
    %1213 = vmatmul.mubr.bf16.gmra.mxu0 %v1130
    %v1214 = vpop.f32.mrf.mxu0
    %v1215 = vadd.f32 0.0, %v1214
    %v1216 = vpop.f32.mrf.mxu0
    %v1217 = vpop.f32.mrf.mxu0
    %v1218 = vadd.f32 0.0, %v1217
    %v1219 = vpop.f32.mrf.mxu0
    %1220 = vmatprep.mubr.bf16.mxu0 0
    %1221 = vmatmul.mubr.bf16.gmra.mxu0 %v1131
    %v1222 = vpop.f32.mrf.mxu0
    %v1223 = vadd.f32 0.0, %v1222
    %v1224 = vpop.f32.mrf.mxu0
    %v1225 = vpop.f32.mrf.mxu0
    %v1226 = vadd.f32 0.0, %v1225
    %v1227 = vpop.f32.mrf.mxu0
    %1228 = vdwg.mxu0
    %v1229 = vmul.f32 %v1167, %v1106
    %v1230 = vmul.f32 %v1170, %v1106
    %v1231 = vmul.f32 %v1175, %v1106
    %v1232 = vmul.f32 %v1178, %v1106
    %v1233 = vmul.f32 %v1183, %v1106
    %v1234 = vmul.f32 %v1186, %v1106
    %v1235 = vmul.f32 %v1191, %v1106
    %v1236 = vmul.f32 %v1194, %v1106
    %v1237 = vmul.f32 %v1199, %v1106
    %v1238 = vmul.f32 %v1202, %v1106
    %v1239 = vmul.f32 %v1207, %v1106
    %v1240 = vmul.f32 %v1210, %v1106
    %v1241 = vmul.f32 %v1215, %v1106
    %v1242 = vmul.f32 %v1218, %v1106
    %v1243 = vmul.f32 %v1223, %v1106
    %v1244 = vmul.f32 %v1226, %v1106
    %v1245 = vld [vmem:[%s2] sm:$0x1]
    %v1247 = vlaneseq
    %v1248 = vshrl.u32 %v1247, 7
    %v1249 = vsub.s32 0, %v1248
    %v1250 = vrot.slane %v1245, %v1249
    %v1252 = vmul.f32 %v1040, %v1250
    %v1253 = vmul.f32 %v1043, %v1250
    %v1254 = vmul.f32 %v1048, %v1250
    %v1255 = vmul.f32 %v1051, %v1250
    %v1256 = vmul.f32 %v1056, %v1250
    %v1257 = vmul.f32 %v1059, %v1250
    %v1258 = vmul.f32 %v1064, %v1250
    %v1259 = vmul.f32 %v1067, %v1250
    %v1260 = vmul.f32 %v1072, %v1250
    %v1261 = vmul.f32 %v1075, %v1250
    %v1262 = vmul.f32 %v1080, %v1250
    %v1263 = vmul.f32 %v1083, %v1250
    %v1264 = vmul.f32 %v1088, %v1250
    %v1265 = vmul.f32 %v1091, %v1250
    %v1266 = vmul.f32 %v1096, %v1250
    %v1267 = vmul.f32 %v1099, %v1250
    %v1268 = vsub.f32 %v1229, %v1252
    %v1269 = vsub.f32 %v1230, %v1253
    %v1270 = vsub.f32 %v1231, %v1254
    %v1271 = vsub.f32 %v1232, %v1255
    %v1272 = vsub.f32 %v1233, %v1256
    %v1273 = vsub.f32 %v1234, %v1257
    %v1274 = vsub.f32 %v1235, %v1258
    %v1275 = vsub.f32 %v1236, %v1259
    %v1276 = vsub.f32 %v1237, %v1260
    %v1277 = vsub.f32 %v1238, %v1261
    %v1278 = vsub.f32 %v1239, %v1262
    %v1279 = vsub.f32 %v1240, %v1263
    %v1280 = vsub.f32 %v1241, %v1264
    %v1281 = vsub.f32 %v1242, %v1265
    %v1282 = vsub.f32 %v1243, %v1266
    %v1283 = vsub.f32 %v1244, %v1267
    %v1284 = vld [vmem:[%s9] sm:$0xff]
    %v1285 = vld [vmem:[%s9 + $0x8] sm:$0xff]
    %v1286 = vld [vmem:[%s9 + $0x10] sm:$0xff]
    %v1287 = vld [vmem:[%s9 + $0x18] sm:$0xff]
    %v1288 = vld [vmem:[%s9 + $0x20] sm:$0xff]
    %v1289 = vld [vmem:[%s9 + $0x28] sm:$0xff]
    %v1290 = vld [vmem:[%s9 + $0x30] sm:$0xff]
    %v1291 = vld [vmem:[%s9 + $0x38] sm:$0xff]
    %v1292 = vld [vmem:[%s9 + $0x40] sm:$0xff]
    %v1293 = vld [vmem:[%s9 + $0x48] sm:$0xff]
    %v1294 = vld [vmem:[%s9 + $0x50] sm:$0xff]
    %v1295 = vld [vmem:[%s9 + $0x58] sm:$0xff]
    %v1296 = vld [vmem:[%s9 + $0x60] sm:$0xff]
    %v1297 = vld [vmem:[%s9 + $0x68] sm:$0xff]
    %v1298 = vld [vmem:[%s9 + $0x70] sm:$0xff]
    %v1299 = vld [vmem:[%s9 + $0x78] sm:$0xff]
    %1301 = vset.pattern.permute.xlu0 0
    %1302 = vperm.xlu0 %1301, %v1284
    %v1303 = vpop.permute.xlu0 %1302
    %1306 = vset.pattern.permute.xlu0 0
    %1307 = vperm.xlu0 %1306, %v1285
    %v1308 = vpop.permute.xlu0 %1307
    %1311 = vset.pattern.permute.xlu0 0
    %1312 = vperm.xlu0 %1311, %v1286
    %v1313 = vpop.permute.xlu0 %1312
    %1316 = vset.pattern.permute.xlu0 0
    %1317 = vperm.xlu0 %1316, %v1287
    %v1318 = vpop.permute.xlu0 %1317
    %1321 = vset.pattern.permute.xlu0 0
    %1322 = vperm.xlu0 %1321, %v1288
    %v1323 = vpop.permute.xlu0 %1322
    %1326 = vset.pattern.permute.xlu0 0
    %1327 = vperm.xlu0 %1326, %v1289
    %v1328 = vpop.permute.xlu0 %1327
    %1331 = vset.pattern.permute.xlu0 0
    %1332 = vperm.xlu0 %1331, %v1290
    %v1333 = vpop.permute.xlu0 %1332
    %1336 = vset.pattern.permute.xlu0 0
    %1337 = vperm.xlu0 %1336, %v1291
    %v1338 = vpop.permute.xlu0 %1337
    %1341 = vset.pattern.permute.xlu0 0
    %1342 = vperm.xlu0 %1341, %v1292
    %v1343 = vpop.permute.xlu0 %1342
    %1346 = vset.pattern.permute.xlu0 0
    %1347 = vperm.xlu0 %1346, %v1293
    %v1348 = vpop.permute.xlu0 %1347
    %1351 = vset.pattern.permute.xlu0 0
    %1352 = vperm.xlu0 %1351, %v1294
    %v1353 = vpop.permute.xlu0 %1352
    %1356 = vset.pattern.permute.xlu0 0
    %1357 = vperm.xlu0 %1356, %v1295
    %v1358 = vpop.permute.xlu0 %1357
    %1361 = vset.pattern.permute.xlu0 0
    %1362 = vperm.xlu0 %1361, %v1296
    %v1363 = vpop.permute.xlu0 %1362
    %1366 = vset.pattern.permute.xlu0 0
    %1367 = vperm.xlu0 %1366, %v1297
    %v1368 = vpop.permute.xlu0 %1367
    %1371 = vset.pattern.permute.xlu0 0
    %1372 = vperm.xlu0 %1371, %v1298
    %v1373 = vpop.permute.xlu0 %1372
    %1376 = vset.pattern.permute.xlu0 0
    %1377 = vperm.xlu0 %1376, %v1299
    %v1378 = vpop.permute.xlu0 %1377
    %v1380 = vadd.f32 %v1268, %v1303
    %v1381 = vadd.f32 %v1269, %v1308
    %v1382 = vadd.f32 %v1270, %v1313
    %v1383 = vadd.f32 %v1271, %v1318
    %v1384 = vadd.f32 %v1272, %v1323
    %v1385 = vadd.f32 %v1273, %v1328
    %v1386 = vadd.f32 %v1274, %v1333
    %v1387 = vadd.f32 %v1275, %v1338
    %v1388 = vadd.f32 %v1276, %v1343
    %v1389 = vadd.f32 %v1277, %v1348
    %v1390 = vadd.f32 %v1278, %v1353
    %v1391 = vadd.f32 %v1279, %v1358
    %v1392 = vadd.f32 %v1280, %v1363
    %v1393 = vadd.f32 %v1281, %v1368
    %v1394 = vadd.f32 %v1282, %v1373
    %v1395 = vadd.f32 %v1283, %v1378
    %1396 = vst [vmem:[#allocation4] sm:$0xff] %v1380
    %1397 = vst [vmem:[#allocation4 + $0x8] sm:$0xff] %v1381
    %1398 = vst [vmem:[#allocation4 + $0x10] sm:$0xff] %v1382
    %1399 = vst [vmem:[#allocation4 + $0x18] sm:$0xff] %v1383
    %1400 = vst [vmem:[#allocation4 + $0x20] sm:$0xff] %v1384
    %1401 = vst [vmem:[#allocation4 + $0x28] sm:$0xff] %v1385
    %1402 = vst [vmem:[#allocation4 + $0x30] sm:$0xff] %v1386
    %1403 = vst [vmem:[#allocation4 + $0x38] sm:$0xff] %v1387
    %1404 = vst [vmem:[#allocation4 + $0x40] sm:$0xff] %v1388
    %1405 = vst [vmem:[#allocation4 + $0x48] sm:$0xff] %v1389
    %1406 = vst [vmem:[#allocation4 + $0x50] sm:$0xff] %v1390
    %1407 = vst [vmem:[#allocation4 + $0x58] sm:$0xff] %v1391
    %1408 = vst [vmem:[#allocation4 + $0x60] sm:$0xff] %v1392
    %1409 = vst [vmem:[#allocation4 + $0x68] sm:$0xff] %v1393
    %1410 = vst [vmem:[#allocation4 + $0x70] sm:$0xff] %v1394
    %1411 = vst [vmem:[#allocation4 + $0x78] sm:$0xff] %v1395
    %v1412 = vlaneseq
    %v1413 = vshrl.u32 %v1412, 7
    %v1414 = vadd.s32 %v1413, 8
    %v1415 = vadd.s32 %v1413, 16
    %v1416 = vadd.s32 %v1413, 24
    %v1417 = vadd.s32 %v1413, 32
    %v1418 = vadd.s32 %v1413, 40
    %v1419 = vadd.s32 %v1413, 48
    %v1420 = vadd.s32 %v1413, 56
    %v1421 = vadd.s32 %v1413, 64
    %v1422 = vadd.s32 %v1413, 72
    %v1423 = vadd.s32 %v1413, 80
    %v1424 = vadd.s32 %v1413, 88
    %v1425 = vadd.s32 %v1413, 96
    %v1426 = vadd.s32 %v1413, 104
    %v1427 = vadd.s32 %v1413, 112
    %v1428 = vadd.s32 %v1413, 120
    %vm1429 = vcmp.lt.s32.totalorder %v1413, 8
    %vm1430 = vcmp.lt.s32.totalorder %v1414, 8
    %vm1431 = vcmp.lt.s32.totalorder %v1415, 8
    %vm1432 = vcmp.lt.s32.totalorder %v1416, 8
    %vm1433 = vcmp.lt.s32.totalorder %v1417, 8
    %vm1434 = vcmp.lt.s32.totalorder %v1418, 8
    %vm1435 = vcmp.lt.s32.totalorder %v1419, 8
    %vm1436 = vcmp.lt.s32.totalorder %v1420, 8
    %vm1437 = vcmp.lt.s32.totalorder %v1421, 8
    %vm1438 = vcmp.lt.s32.totalorder %v1422, 8
    %vm1439 = vcmp.lt.s32.totalorder %v1423, 8
    %vm1440 = vcmp.lt.s32.totalorder %v1424, 8
    %vm1441 = vcmp.lt.s32.totalorder %v1425, 8
    %vm1442 = vcmp.lt.s32.totalorder %v1426, 8
    %vm1443 = vcmp.lt.s32.totalorder %v1427, 8
    %vm1444 = vcmp.lt.s32.totalorder %v1428, 8
    %v1445 = vsel %vm1429, %v1380, -1e+30
    %v1446 = vsel %vm1430, %v1381, -1e+30
    %v1447 = vsel %vm1431, %v1382, -1e+30
    %v1448 = vsel %vm1432, %v1383, -1e+30
    %v1449 = vsel %vm1433, %v1384, -1e+30
    %v1450 = vsel %vm1434, %v1385, -1e+30
    %v1451 = vsel %vm1435, %v1386, -1e+30
    %v1452 = vsel %vm1436, %v1387, -1e+30
    %v1453 = vsel %vm1437, %v1388, -1e+30
    %v1454 = vsel %vm1438, %v1389, -1e+30
    %v1455 = vsel %vm1439, %v1390, -1e+30
    %v1456 = vsel %vm1440, %v1391, -1e+30
    %v1457 = vsel %vm1441, %v1392, -1e+30
    %v1458 = vsel %vm1442, %v1393, -1e+30
    %v1459 = vsel %vm1443, %v1394, -1e+30
    %v1460 = vsel %vm1444, %v1395, -1e+30
    %v1461 = vmax.f32 %v1445, %v1449
    %v1462 = vmax.f32 %v1446, %v1450
    %v1463 = vmax.f32 %v1447, %v1451
    %v1464 = vmax.f32 %v1448, %v1452
    %v1465 = vmax.f32 %v1461, %v1453
    %v1466 = vmax.f32 %v1462, %v1454
    %v1467 = vmax.f32 %v1463, %v1455
    %v1468 = vmax.f32 %v1464, %v1456
    %v1469 = vmax.f32 %v1465, %v1457
    %v1470 = vmax.f32 %v1466, %v1458
    %v1471 = vmax.f32 %v1467, %v1459
    %v1472 = vmax.f32 %v1468, %v1460
    %v1473 = vmax.f32 %v1469, %v1470
    %v1474 = vmax.f32 %v1471, %v1472
    %v1475 = vmax.f32 %v1473, %v1474
    %v1476 = vrot.slane %v1475, 4
    %v1477 = vmax.f32 %v1475, %v1476
    %v1478 = vrot.slane %v1477, 2
    %v1479 = vmax.f32 %v1477, %v1478
    %v1480 = vrot.slane %v1479, 1
    %v1481 = vmax.f32 %v1479, %v1480
    %v1482 = vsub.f32 %v1445, %v1481
    %v1483 = vsub.f32 %v1446, %v1481
    %v1484 = vsub.f32 %v1447, %v1481
    %v1485 = vsub.f32 %v1448, %v1481
    %v1486 = vsub.f32 %v1449, %v1481
    %v1487 = vsub.f32 %v1450, %v1481
    %v1488 = vsub.f32 %v1451, %v1481
    %v1489 = vsub.f32 %v1452, %v1481
    %v1490 = vsub.f32 %v1453, %v1481
    %v1491 = vsub.f32 %v1454, %v1481
    %v1492 = vsub.f32 %v1455, %v1481
    %v1493 = vsub.f32 %v1456, %v1481
    %v1494 = vsub.f32 %v1457, %v1481
    %v1495 = vsub.f32 %v1458, %v1481
    %v1496 = vsub.f32 %v1459, %v1481
    %v1497 = vsub.f32 %v1460, %v1481
    %v1498 = vmul.f32 %v1482, 1.442695
    %v1499 = vpow.pop %v1498
    %v1500 = vmul.f32 %v1483, 1.442695
    %v1501 = vpow.pop %v1500
    %v1502 = vmul.f32 %v1484, 1.442695
    %v1503 = vpow.pop %v1502
    %v1504 = vmul.f32 %v1485, 1.442695
    %v1505 = vpow.pop %v1504
    %v1506 = vmul.f32 %v1486, 1.442695
    %v1507 = vpow.pop %v1506
    %v1508 = vmul.f32 %v1487, 1.442695
    %v1509 = vpow.pop %v1508
    %v1510 = vmul.f32 %v1488, 1.442695
    %v1511 = vpow.pop %v1510
    %v1512 = vmul.f32 %v1489, 1.442695
    %v1513 = vpow.pop %v1512
    %v1514 = vmul.f32 %v1490, 1.442695
    %v1515 = vpow.pop %v1514
    %v1516 = vmul.f32 %v1491, 1.442695
    %v1517 = vpow.pop %v1516
    %v1518 = vmul.f32 %v1492, 1.442695
    %v1519 = vpow.pop %v1518
    %v1520 = vmul.f32 %v1493, 1.442695
    %v1521 = vpow.pop %v1520
    %v1522 = vmul.f32 %v1494, 1.442695
    %v1523 = vpow.pop %v1522
    %v1524 = vmul.f32 %v1495, 1.442695
    %v1525 = vpow.pop %v1524
    %v1526 = vmul.f32 %v1496, 1.442695
    %v1527 = vpow.pop %v1526
    %v1528 = vmul.f32 %v1497, 1.442695
    %v1529 = vpow.pop %v1528
    %v1530 = vadd.f32 %v1499, %v1501
    %v1531 = vadd.f32 %v1530, %v1503
    %v1532 = vadd.f32 %v1531, %v1505
    %v1533 = vadd.f32 %v1532, %v1507
    %v1534 = vadd.f32 %v1533, %v1509
    %v1535 = vadd.f32 %v1534, %v1511
    %v1536 = vadd.f32 %v1535, %v1513
    %v1537 = vadd.f32 %v1536, %v1515
    %v1538 = vadd.f32 %v1537, %v1517
    %v1539 = vadd.f32 %v1538, %v1519
    %v1540 = vadd.f32 %v1539, %v1521
    %v1541 = vadd.f32 %v1540, %v1523
    %v1542 = vadd.f32 %v1541, %v1525
    %v1543 = vadd.f32 %v1542, %v1527
    %v1544 = vadd.f32 %v1543, %v1529
    %v1545 = vrot.slane %v1544, 4
    %v1546 = vadd.f32 %v1544, %v1545
    %v1547 = vrot.slane %v1546, 2
    %v1548 = vadd.f32 %v1546, %v1547
    %v1549 = vrot.slane %v1548, 1
    %v1550 = vadd.f32 %v1548, %v1549
    %v1551 = vlog2.pop %v1550
    %v1552 = vmul.f32 %v1551, 0.6931472
    %v1553 = vsub.f32 %v1482, %v1552
    %v1554 = vsub.f32 %v1483, %v1552
    %v1555 = vsub.f32 %v1484, %v1552
    %v1556 = vsub.f32 %v1485, %v1552
    %v1557 = vsub.f32 %v1486, %v1552
    %v1558 = vsub.f32 %v1487, %v1552
    %v1559 = vsub.f32 %v1488, %v1552
    %v1560 = vsub.f32 %v1489, %v1552
    %v1561 = vsub.f32 %v1490, %v1552
    %v1562 = vsub.f32 %v1491, %v1552
    %v1563 = vsub.f32 %v1492, %v1552
    %v1564 = vsub.f32 %v1493, %v1552
    %v1565 = vsub.f32 %v1494, %v1552
    %v1566 = vsub.f32 %v1495, %v1552
    %v1567 = vsub.f32 %v1496, %v1552
    %v1568 = vsub.f32 %v1497, %v1552
    %1569 = vst [vmem:[#allocation2] sm:$0xff] %v1553
    %1570 = vst [vmem:[#allocation2 + $0x8] sm:$0xff] %v1554
    %1571 = vst [vmem:[#allocation2 + $0x10] sm:$0xff] %v1555
    %1572 = vst [vmem:[#allocation2 + $0x18] sm:$0xff] %v1556
    %1573 = vst [vmem:[#allocation2 + $0x20] sm:$0xff] %v1557
    %1574 = vst [vmem:[#allocation2 + $0x28] sm:$0xff] %v1558
    %1575 = vst [vmem:[#allocation2 + $0x30] sm:$0xff] %v1559
    %1576 = vst [vmem:[#allocation2 + $0x38] sm:$0xff] %v1560
    %1577 = vst [vmem:[#allocation2 + $0x40] sm:$0xff] %v1561
    %1578 = vst [vmem:[#allocation2 + $0x48] sm:$0xff] %v1562
    %1579 = vst [vmem:[#allocation2 + $0x50] sm:$0xff] %v1563
    %1580 = vst [vmem:[#allocation2 + $0x58] sm:$0xff] %v1564
    %1581 = vst [vmem:[#allocation2 + $0x60] sm:$0xff] %v1565
    %1582 = vst [vmem:[#allocation2 + $0x68] sm:$0xff] %v1566
    %1583 = vst [vmem:[#allocation2 + $0x70] sm:$0xff] %v1567
    %1584 = vst [vmem:[#allocation2 + $0x78] sm:$0xff] %v1568
    // Predicated region
    $region42: #{tpu_custom_call.1} parent=1 // pred_check
      _
    $region43: #{tpu_custom_call.1} parent=1 // pred_check_branch
      %1586 = sbr.rel (0) target = $region45
    $region44: #{tpu_custom_call.1} parent=1 // pred_region
      %s1588 = ssub.s32 2048, 2048
      %1589 = vsyncadd [#allocation3], %s1588
      %s1590 = sshll.u32 [#allocation2], 4
      %s1591 = int_to_ptr.vmem [resolvable:$true] %s1590
      %1596 = dma.vmem_to_hbm [thread:$0]  %s1591, 2048, %s10, [#allocation3], 128, 128, 8
    $region45: #{tpu_custom_call.1} parent=1 // pred_fallthru
      _
    // Predicated region
    $region46: #{tpu_custom_call.1} parent=1 // pred_check
      _
    $region47: #{tpu_custom_call.1} parent=1 // pred_check_branch
      %1598 = sbr.rel (0) target = $region49
    $region48: #{tpu_custom_call.1} parent=1 // pred_region
      %s1600 = ssub.s32 2048, 2048
      %1601 = vsyncadd [#allocation5], %s1600
      %s1602 = sshll.u32 [#allocation4], 4
      %s1603 = int_to_ptr.vmem [resolvable:$true] %s1602
      %1608 = dma.vmem_to_hbm [thread:$0]  %s1603, 2048, %s11, [#allocation5], 128, 128, 8
    $region49: #{tpu_custom_call.1} parent=1 // pred_fallthru
      _
    // Predicated region
    $region50: #{tpu_custom_call.1} parent=1 // pred_check
      _
    $region51: #{tpu_custom_call.1} parent=1 // pred_check_branch
      %1610 = sbr.rel (0) target = $region53
    $region52: #{tpu_custom_call.1} parent=1 // pred_region
      %1611 = dma.done [#allocation3], 2048
    $region53: #{tpu_custom_call.1} parent=1 // pred_fallthru
      _
    // Predicated region
    $region54: #{tpu_custom_call.1} parent=1 // pred_check
      _
    $region55: #{tpu_custom_call.1} parent=1 // pred_check_branch
      %1613 = sbr.rel (0) target = $region57
    $region56: #{tpu_custom_call.1} parent=1 // pred_region
      %1614 = dma.done [#allocation5], 2048
    $region57: #{tpu_custom_call.1} parent=1 // pred_fallthru
      _
    %1615 = vsyncpa [#allocation3], 1
    %1616 = vsyncpa [#allocation5], 1

</llo_original>
